<compile_context>
chip_gen: v6e
topology: v6e:2x2x1
jax: 0.10.0
libtpu: 0.0.40
codegen_flags: <defaults>
</compile_context>

<pallas_src>
import functools

import jax
import jax.numpy as jnp
from jax import lax
from jax.experimental import pallas as pl
from jax.experimental.pallas import tpu as pltpu

LN_EPS = 1e-5  # torch.nn.LayerNorm default


# ---------------------------------------------------------------------------
# Chip-aware configuration
# ---------------------------------------------------------------------------
def _tpu_vmem_capacity_bytes():
    try:
        info = pltpu.get_tpu_info()
        cap = getattr(info, "vmem_capacity_bytes", None)
        if cap:
            return int(cap)
    except Exception:
        pass
    return None


_VMEM_CAP = _tpu_vmem_capacity_bytes()
# Leave ~20% headroom for internal scratch / semaphores; never equal physical.
_VMEM_LIMIT_BYTES = None if _VMEM_CAP is None else int(_VMEM_CAP * 0.8)
_BIG_VMEM = (_VMEM_CAP is not None) and _VMEM_CAP >= 100 * 1024 * 1024


def _compiler_params(dims):
    kw = dict(dimension_semantics=dims)
    if _VMEM_LIMIT_BYTES is not None:
        kw["vmem_limit_bytes"] = _VMEM_LIMIT_BYTES
    return pltpu.CompilerParams(**kw)


@functools.lru_cache(maxsize=None)
def _single_buffer_ok():
    """True if this JAX build supports pl.Buffered(1) for grid-invariant
    operands (probed once with a tiny kernel, eager)."""
    if not hasattr(pl, "Buffered"):
        return False
    try:
        def _probe(x_ref, o_ref):
            o_ref[...] = x_ref[...] + 1.0

        out = pl.pallas_call(
            _probe,
            grid=(2,),
            in_specs=[pl.BlockSpec((8, 128), lambda i: (0, 0),
                                   pipeline_mode=pl.Buffered(1))],
            out_specs=pl.BlockSpec((8, 128), lambda i: (i, 0)),
            out_shape=jax.ShapeDtypeStruct((16, 128), jnp.float32),
        )(jnp.zeros((8, 128), jnp.float32))
        jax.block_until_ready(out)
        return True
    except Exception:
        return False


def _weight_spec(shape, index_map):
    """BlockSpec for a grid-invariant weight; single-buffered when supported
    (halves the VMEM cost of resident weights, matters on v7x's 64 MiB)."""
    if _single_buffer_ok():
        return pl.BlockSpec(shape, index_map, pipeline_mode=pl.Buffered(1))
    return pl.BlockSpec(shape, index_map)


def _row_tile(n, target):
    """Largest multiple-of-8 divisor of n that is <= target (else n)."""
    if n <= target:
        return n
    for t in range(target, 7, -8):
        if n % t == 0:
            return t
    return n  # TODO(synk): pad instead of full-extent fallback for awkward N.


def _lane_tile(n, target):
    """Largest multiple-of-128 divisor of n that is <= target (else n)."""
    if n <= target:
        return n
    for t in range(target, 127, -128):
        if n % t == 0:
            return t
    return n  # TODO(synk): pad instead of full-extent fallback for awkward N.


# ---------------------------------------------------------------------------
# In-kernel math helpers
# ---------------------------------------------------------------------------
def _layernorm(x, gamma, beta):
    mean = jnp.mean(x, axis=-1, keepdims=True)
    var = jnp.mean(jnp.square(x - mean), axis=-1, keepdims=True)
    return (x - mean) * lax.rsqrt(var + LN_EPS) * gamma + beta


def _erf_poly(x):
    # Abramowitz & Stegun 7.1.26 (max abs err ~1.5e-7): only exp/mul/add, so
    # it is guaranteed to lower on Mosaic (no lax.erf dependence).
    a1, a2, a3, a4, a5 = (0.254829592, -0.284496736, 1.421413741,
                          -1.453152027, 1.061405429)
    p = 0.3275911
    ax = jnp.abs(x)
    t = 1.0 / (1.0 + p * ax)
    poly = ((((a5 * t + a4) * t + a3) * t + a2) * t + a1) * t
    y = 1.0 - poly * jnp.exp(-ax * ax)
    return jnp.where(x >= 0, y, -y)


def _gelu_exact(x):
    # torch.nn.GELU default (exact erf form), via the polynomial above.
    return 0.5 * x * (1.0 + _erf_poly(x * 0.7071067811865476))


# ---------------------------------------------------------------------------
# Kernel 1: norm1 + score_mlp + squared norms + K/V projections, tiled over N
# ---------------------------------------------------------------------------
def norm_score_kv_kernel(x_ref, g1_ref, b1_ref, ws_ref, bs_ref, wk_ref, wv_ref,
                         xn_ref, k_ref, v_ref, score_ref, sqr_ref, sqc_ref):
    f32 = jnp.float32
    x = x_ref[...].astype(f32)                                      # (tn, C)
    xn = _layernorm(x, g1_ref[...].astype(f32), b1_ref[...].astype(f32))
    xn_ref[...] = xn.astype(xn_ref.dtype)

    # K / V projections: done exactly once per token (hoisted out of the
    # attention kernel), emitted in bf16 for the MXU.
    cdt = wk_ref.dtype
    xn_c = xn.astype(cdt)
    k_ref[...] = jnp.dot(xn_c, wk_ref[...],
                         preferred_element_type=f32).astype(k_ref.dtype)
    v_ref[...] = jnp.dot(xn_c, wv_ref[...],
                         preferred_element_type=f32).astype(v_ref.dtype)

    # token_score = score_mlp(norm1(x)) as a lane-dense (1, tn) row.
    score = lax.dot_general(ws_ref[...].astype(f32), xn,
                            (((1,), (1,)), ((), ())),
                            preferred_element_type=f32)             # (1, tn)
    score_ref[...] = (score + bs_ref[...].astype(f32)).astype(score_ref.dtype)

    # Squared row norms in both column (tn,1) and lane-dense row (1,tn) form,
    # so the distance kernel never recomputes or transposes them.
    xn2 = xn * xn
    sqc = jnp.sum(xn2, axis=-1, keepdims=True)                      # (tn, 1)
    sqc_ref[...] = sqc.astype(sqc_ref.dtype)
    ones_row = jnp.ones((1, xn.shape[-1]), f32)
    sqr_ref[...] = lax.dot_general(ones_row, xn2, (((1,), (1,)), ((), ())),
                                   preferred_element_type=f32
                                   ).astype(sqr_ref.dtype)          # (1, tn)


def stm_norm_score_kv(x, g1, b1, w_score, b_score, wk, wv):
    B, N, C = x.shape
    tn = _lane_tile(N, 1024 if _BIG_VMEM else 512)
    f32 = jnp.float32
    return pl.pallas_call(
        norm_score_kv_kernel,
        grid=(B, N // tn),
        in_specs=[
            pl.BlockSpec((None, tn, C), lambda b, n: (b, n, 0)),
            _weight_spec((1, C), lambda b, n: (0, 0)),
            _weight_spec((1, C), lambda b, n: (0, 0)),
            _weight_spec((1, C), lambda b, n: (0, 0)),
            _weight_spec((1, 1), lambda b, n: (0, 0)),
            _weight_spec((C, C), lambda b, n: (0, 0)),
            _weight_spec((C, C), lambda b, n: (0, 0)),
        ],
        out_specs=[
            pl.BlockSpec((None, tn, C), lambda b, n: (b, n, 0)),
            pl.BlockSpec((None, tn, C), lambda b, n: (b, n, 0)),
            pl.BlockSpec((None, tn, C), lambda b, n: (b, n, 0)),
            pl.BlockSpec((None, 1, tn), lambda b, n: (b, 0, n)),
            pl.BlockSpec((None, 1, tn), lambda b, n: (b, 0, n)),
            pl.BlockSpec((None, tn, 1), lambda b, n: (b, n, 0)),
        ],
        out_shape=(
            jax.ShapeDtypeStruct((B, N, C), f32),       # x_norm (f32: clustering is tie-sensitive)
            jax.ShapeDtypeStruct((B, N, C), wk.dtype),  # K (bf16)
            jax.ShapeDtypeStruct((B, N, C), wv.dtype),  # V (bf16)
            jax.ShapeDtypeStruct((B, 1, N), f32),       # token_score, lane-dense
            jax.ShapeDtypeStruct((B, 1, N), f32),       # sq norms, row form
            jax.ShapeDtypeStruct((B, N, 1), f32),       # sq norms, column form
        ),
        compiler_params=_compiler_params(("parallel", "parallel")),
    )(x, g1, b1, w_score, b_score, wk, wv)


# ---------------------------------------------------------------------------
# Kernel 2: tiled distance matrix  dist = cdist(xn, xn) / sqrt(dim)
# ---------------------------------------------------------------------------
def dist_kernel(xi_ref, xj_ref, sqi_ref, sqj_ref, dist_ref, *, inv_sqrt_dim):
    f32 = jnp.float32
    xi = xi_ref[...].astype(f32)                                    # (ti, C)
    xj = xj_ref[...].astype(f32)                                    # (tj, C)
    # f32 Gram on purpose: clustering (top-k / argmin) is tie-sensitive.
    gram = lax.dot_general(xi, xj, (((1,), (1,)), ((), ())),
                           preferred_element_type=f32)              # (ti, tj)
    d2 = jnp.maximum(sqi_ref[...] + sqj_ref[...] - 2.0 * gram, 0.0)
    dist_ref[...] = (jnp.sqrt(d2) * inv_sqrt_dim).astype(dist_ref.dtype)


def stm_distance(xn, sq_col, sq_row, dim):
    B, N, C = xn.shape
    ti = _row_tile(N, 512 if _BIG_VMEM else 256)
    tj = _lane_tile(N, 1024 if _BIG_VMEM else 512)
    kern = functools.partial(dist_kernel, inv_sqrt_dim=float(dim) ** -0.5)
    return pl.pallas_call(
        kern,
        grid=(B, N // ti, N // tj),
        in_specs=[
            pl.BlockSpec((None, ti, C), lambda b, i, j: (b, i, 0)),
            pl.BlockSpec((None, tj, C), lambda b, i, j: (b, j, 0)),
            pl.BlockSpec((None, ti, 1), lambda b, i, j: (b, i, 0)),
            pl.BlockSpec((None, 1, tj), lambda b, i, j: (b, 0, j)),
        ],
        out_specs=pl.BlockSpec((None, ti, tj), lambda b, i, j: (b, i, j)),
        out_shape=jax.ShapeDtypeStruct((B, N, N), jnp.float32),
        compiler_params=_compiler_params(("parallel", "parallel", "parallel")),
    )(xn, xn, sq_col, sq_row)


# ---------------------------------------------------------------------------
# Kernel 3: per-head flash attention with online softmax over the KV axis
# ---------------------------------------------------------------------------
def attention_kernel(q_ref, wq_ref, k_ref, v_ref, conf_ref, ctx_ref,
                     qh_sc, m_sc, l_sc, acc_sc):
    f32 = jnp.float32
    kv = pl.program_id(3)

    @pl.when(kv == 0)
    def _():
        # Per-head Q projection (qk scale already folded into wq) computed
        # once per (b, h, s) tile and kept in VMEM scratch.
        q = jnp.dot(q_ref[...].astype(wq_ref.dtype), wq_ref[...],
                    preferred_element_type=f32)                     # (ts, d)
        qh_sc[...] = q.astype(qh_sc.dtype)
        m_sc[...] = jnp.full(m_sc.shape, -jnp.inf, dtype=m_sc.dtype)
        l_sc[...] = jnp.zeros(l_sc.shape, l_sc.dtype)
        acc_sc[...] = jnp.zeros(acc_sc.shape, acc_sc.dtype)

    k = k_ref[...]                                                  # (tkv, d)
    v = v_ref[...]
    logits = lax.dot_general(qh_sc[...], k, (((1,), (1,)), ((), ())),
                             preferred_element_type=f32)            # (ts, tkv)
    logits = logits + conf_ref[...].astype(f32)     # token-score bias per kv token

    m_prev = m_sc[...]
    m_new = jnp.maximum(m_prev, jnp.max(logits, axis=-1, keepdims=True))
    alpha = jnp.exp(m_prev - m_new)
    p = jnp.exp(logits - m_new)
    l_sc[...] = alpha * l_sc[...] + jnp.sum(p, axis=-1, keepdims=True)
    acc_sc[...] = alpha * acc_sc[...] + jnp.dot(p.astype(v.dtype), v,
                                                preferred_element_type=f32)
    m_sc[...] = m_new

    @pl.when(kv == pl.num_programs(3) - 1)
    def _():
        ctx_ref[...] = (acc_sc[...] *
                        pl.reciprocal(l_sc[...], approx=True)).astype(ctx_ref.dtype)


def stm_attention(q_input, wq_h, k_h, v_h, token_score):
    B, S, C = q_input.shape
    H, _, d = wq_h.shape
    N = k_h.shape[2]
    ts = _row_tile(S, 256)
    tkv = _lane_tile(N, 1024 if _BIG_VMEM else 512)
    return pl.pallas_call(
        attention_kernel,
        grid=(B, H, S // ts, N // tkv),
        in_specs=[
            pl.BlockSpec((None, ts, C), lambda b, h, s, kv: (b, s, 0)),
            pl.BlockSpec((None, C, d), lambda b, h, s, kv: (h, 0, 0)),
            pl.BlockSpec((None, None, tkv, d), lambda b, h, s, kv: (b, h, kv, 0)),
            pl.BlockSpec((None, None, tkv, d), lambda b, h, s, kv: (b, h, kv, 0)),
            pl.BlockSpec((None, 1, tkv), lambda b, h, s, kv: (b, 0, kv)),
        ],
        out_specs=pl.BlockSpec((None, None, ts, d),
                               lambda b, h, s, kv: (b, h, s, 0)),
        out_shape=jax.ShapeDtypeStruct((B, H, S, d), k_h.dtype),
        scratch_shapes=[
            pltpu.VMEM((ts, d), k_h.dtype),       # q head (scale folded, bf16)
            pltpu.VMEM((ts, 1), jnp.float32),     # running max
            pltpu.VMEM((ts, 1), jnp.float32),     # running denom
            pltpu.VMEM((ts, d), jnp.float32),     # running accumulator
        ],
        compiler_params=_compiler_params(
            ("parallel", "parallel", "parallel", "arbitrary")),
    )(q_input, wq_h, k_h, v_h, token_score)


# ---------------------------------------------------------------------------
# Kernel 4: output proj + residual + norm2 + MLP + residual
# ---------------------------------------------------------------------------
def tail_kernel(q_ref, ctx_ref, wproj_ref, bproj_ref, g2_ref, b2_ref,
                w1_ref, bm1_ref, w2_ref, bm2_ref, out_ref):
    f32 = jnp.float32
    cdt = wproj_ref.dtype
    qin = q_ref[...].astype(f32)                                    # (ts, C)

    attn = jnp.dot(ctx_ref[...].astype(cdt), wproj_ref[...],
                   preferred_element_type=f32) + bproj_ref[...].astype(f32)
    feat = qin + attn                                               # residual 1

    xn = _layernorm(feat, g2_ref[...].astype(f32), b2_ref[...].astype(f32))
    h1 = jnp.dot(xn.astype(cdt), w1_ref[...],
                 preferred_element_type=f32) + bm1_ref[...].astype(f32)
    h1 = _gelu_exact(h1)
    mlp = jnp.dot(h1.astype(cdt), w2_ref[...],
                  preferred_element_type=f32) + bm2_ref[...].astype(f32)
    out_ref[...] = (feat + mlp).astype(out_ref.dtype)               # residual 2


def stm_tail(q_input, ctx, params, *, compute_dtype):
    B, S, C = q_input.shape
    Hm = params["w1"].shape[1]
    ts = _row_tile(S, 256)
    if B * (S // ts) < 2 and ts % 16 == 0:
        ts //= 2  # expose >=2 parallel grid steps (v7x has 2 TensorCores)

    wproj = params["wproj"].astype(compute_dtype)
    w1 = params["w1"].astype(compute_dtype)
    w2 = params["w2"].astype(compute_dtype)

    def wspec(shape):
        return _weight_spec(shape, lambda b, s: (0, 0))

    return pl.pallas_call(
        tail_kernel,
        grid=(B, S // ts),
        in_specs=[
            pl.BlockSpec((None, ts, C), lambda b, s: (b, s, 0)),
            pl.BlockSpec((None, ts, C), lambda b, s: (b, s, 0)),
            wspec((C, C)), wspec((1, C)),
            wspec((1, C)), wspec((1, C)),
            wspec((C, Hm)), wspec((1, Hm)), wspec((Hm, C)), wspec((1, C)),
        ],
        out_specs=pl.BlockSpec((None, ts, C), lambda b, s: (b, s, 0)),
        out_shape=jax.ShapeDtypeStruct((B, S, C), q_input.dtype),
        compiler_params=_compiler_params(("parallel", "parallel")),
    )(q_input, ctx, wproj, params["bproj"], params["g2"], params["b2"],
      w1, params["bm1"], w2, params["bm2"])


# ---------------------------------------------------------------------------
# Clustering + merger: data-dependent top-k / argmin / scatter-add, plain JAX.
# ---------------------------------------------------------------------------
def cluster(dist, *, k, out_token_len, noise_key):
    # TODO(synk): top-k, argmin and scatter-assignment have no clean Pallas
    # equivalent; kept in plain JAX (the distance matrix itself comes from the
    # tiled Pallas dist kernel).  The masked-min "parent distance" pass could
    # be fused into the dist kernel as a second pass for very large N.
    B, N, _ = dist.shape
    neg_vals, _ = lax.top_k(-dist, k)                  # k nearest (largest=False)
    distance_nearest = -neg_vals
    density = jnp.exp(-jnp.mean(distance_nearest ** 2, axis=-1))
    density = density + jax.random.uniform(noise_key, density.shape,
                                           density.dtype) * 1e-6
    mask = density[:, None, :] > density[:, :, None]              # bool mask
    dist_max = jnp.max(dist.reshape(B, -1), axis=-1)[:, None, None]
    d = jnp.min(jnp.where(mask, dist, dist_max), axis=-1)
    score = d * density
    _, index_down = lax.top_k(score, out_token_len)    # (B, S)

    batch_idx = jnp.arange(B)[:, None]
    dist_down = dist[batch_idx, index_down, :]         # (B, S, N)  _index_points
    idx_cluster = jnp.argmin(dist_down, axis=1)        # (B, N)
    idx_tmp = jnp.broadcast_to(jnp.arange(out_token_len)[None, :],
                               (B, out_token_len))
    idx_cluster = idx_cluster.at[batch_idx, index_down].set(idx_tmp)
    return idx_cluster


def merger(feature, idx_cluster, token_score_b1n, out_token_len):
    # TODO(synk): index_add scatter-adds kept in plain JAX (no Pallas scatter).
    B, N, C = feature.shape
    S = out_token_len
    idx = idx_cluster + jnp.arange(B)[:, None] * S     # (B, N) -> flat cluster id
    flat_idx = idx.reshape(-1)
    token_weight = jnp.exp(token_score_b1n).reshape(B, N, 1).astype(feature.dtype)
    all_weight = jnp.zeros((B * S, 1), feature.dtype).at[flat_idx].add(
        token_weight.reshape(-1, 1)) + 1e-6
    norm_weight = token_weight / all_weight[idx]       # (B, N, 1)
    source = (feature * norm_weight).reshape(-1, C)
    merged = jnp.zeros((B * S, C), feature.dtype).at[flat_idx].add(source)
    return merged.reshape(B, S, C)


# ---------------------------------------------------------------------------
# Full STMBlock forward
# ---------------------------------------------------------------------------
def stm_block_forward(x, params, *, out_token_len, k, num_heads, noise_key,
                      compute_dtype=jnp.bfloat16):
    B, N, C = x.shape
    d = C // num_heads
    scale = float(d) ** -0.5                           # qk_scale=None default

    wk = params["wk"].astype(compute_dtype)
    wv = params["wv"].astype(compute_dtype)
    (x_norm, k_bnc, v_bnc, token_score, sq_row, sq_col) = stm_norm_score_kv(
        x, params["g1"], params["b1"], params["w_score"], params["b_score"],
        wk, wv)

    dist = stm_distance(x_norm, sq_col, sq_row, C)
    idx_cluster = cluster(dist, k=k, out_token_len=out_token_len,
                          noise_key=noise_key)
    q_input = merger(x_norm, idx_cluster, token_score, out_token_len)

    # Plain-XLA layout glue: split heads for K/V and lay the (scale-folded,
    # bf16) Q-projection weight out head-major.
    k_h = k_bnc.reshape(B, N, num_heads, d).transpose(0, 2, 1, 3)
    v_h = v_bnc.reshape(B, N, num_heads, d).transpose(0, 2, 1, 3)
    wq_h = (params["wq"] * scale).astype(compute_dtype).reshape(
        C, num_heads, d).transpose(1, 0, 2)

    ctx = stm_attention(q_input, wq_h, k_h, v_h, token_score)       # (B,H,S,d)
    S = out_token_len
    ctx_sc = ctx.transpose(0, 2, 1, 3).reshape(B, S, C)
    return stm_tail(q_input, ctx_sc, params, compute_dtype=compute_dtype)


def init_params(key, dim, mlp_ratio=4.0):
    # Deterministic synthetic weights in [in, out] layout (transposed relative
    # to torch nn.Linear's [out, in]); w_score kept as a (1, dim) row vector,
    # K/V weights stored separately.
    hid = int(dim * mlp_ratio)
    ks = jax.random.split(key, 7)
    s = 0.02
    f32 = jnp.float32
    return {
        "g1": jnp.ones((1, dim), f32), "b1": jnp.zeros((1, dim), f32),
        "w_score": jax.random.normal(ks[0], (1, dim), f32) * s,
        "b_score": jnp.zeros((1, 1), f32),
        "wq": jax.random.normal(ks[1], (dim, dim), f32) * s,
        "wk": jax.random.normal(ks[2], (dim, dim), f32) * s,
        "wv": jax.random.normal(ks[3], (dim, dim), f32) * s,
        "wproj": jax.random.normal(ks[4], (dim, dim), f32) * s,
        "bproj": jnp.zeros((1, dim), f32),
        "g2": jnp.ones((1, dim), f32), "b2": jnp.zeros((1, dim), f32),
        "w1": jax.random.normal(ks[5], (dim, hid), f32) * s,
        "bm1": jnp.zeros((1, hid), f32),
        "w2": jax.random.normal(ks[6], (hid, dim), f32) * s,
        "bm2": jnp.zeros((1, dim), f32),
    }


if __name__ == "__main__":
    B, N, C = 2, 16, 32              # batch, patch_num, dim
    out_token_len, k, num_heads = 8, 4, 4

    key = jax.random.PRNGKey(0)
    xk, pk, nk = jax.random.split(key, 3)
    x = jax.random.normal(xk, (B, N, C), jnp.float32)
    params = init_params(pk, C)

    feature = stm_block_forward(x, params, out_token_len=out_token_len,
                                k=k, num_heads=num_heads, noise_key=nk)
    feature = jax.block_until_ready(feature)
    assert feature.shape == (B, out_token_len, C)
    assert bool(jnp.all(jnp.isfinite(feature)))
    print("KERNEL_OK")
</pallas_src>

<mosaic_0001>
module attributes {stable_mosaic.version = 11 : i64} {
  func.func @_probe(%arg0: i32, %arg1: memref<8x128xf32, #tpu.memory_space<vmem>>, %arg2: memref<8x128xf32, #tpu.memory_space<vmem>>) attributes {dimension_semantics = [#tpu.dimension_semantics<arbitrary>], iteration_bounds = array<i64: 2>, scalar_prefetch = 0 : i64, scratch_operands = 0 : i64, tpu.core_type = #tpu.core_type<tc>, window_params = [{pipeline_mode = #tpu.pipeline_mode<synchronous>, transform_indices = @transform_0, window_bounds = array<i64: 8, 128>}, {transform_indices = @transform_1, window_bounds = array<i64: 8, 128>}]} {
    %c0 = arith.constant 0 : index
    %c0_0 = arith.constant 0 : index
    %0 = vector.load %arg1[%c0, %c0_0] : memref<8x128xf32, #tpu.memory_space<vmem>>, vector<8x128xf32>
    %cst = arith.constant 1.000000e+00 : f32
    %1 = vector.broadcast %cst : f32 to vector<8x128xf32>
    %2 = arith.addf %0, %1 : vector<8x128xf32>
    %c0_1 = arith.constant 0 : index
    %c0_2 = arith.constant 0 : index
    %3 = vector.load %arg2[%c0_1, %c0_2] : memref<8x128xf32, #tpu.memory_space<vmem>>, vector<8x128xf32>
    tpu.vector_store %arg2[%c0_1, %c0_2], %2 {strides = array<i32>} : memref<8x128xf32, #tpu.memory_space<vmem>>, vector<8x128xf32>,
    return
  }
  func.func @transform_0(%arg0: i32) -> (i32, i32) {
    %c0_i32 = arith.constant 0 : i32
    %c0_i32_0 = arith.constant 0 : i32
    %c0_i32_1 = arith.constant 0 : i32
    return %c0_i32, %c0_i32_0 : i32, i32
  }
  func.func @transform_1(%arg0: i32) -> (i32, i32) {
    %c0_i32 = arith.constant 0 : i32
    %c0_i32_0 = arith.constant 0 : i32
    return %arg0, %c0_i32 : i32, i32
  }
}

module attributes {stable_mosaic.version = 11 : i64} {
  func.func @norm_score_kv_kernel(%arg0: i32, %arg1: i32, %arg2: memref<1x16x32xf32, #tpu.memory_space<vmem>>, %arg3: memref<1x32xf32, #tpu.memory_space<vmem>>, %arg4: memref<1x32xf32, #tpu.memory_space<vmem>>, %arg5: memref<1x32xf32, #tpu.memory_space<vmem>>, %arg6: memref<1x1xf32, #tpu.memory_space<vmem>>, %arg7: memref<32x32xbf16, #tpu.memory_space<vmem>>, %arg8: memref<32x32xbf16, #tpu.memory_space<vmem>>, %arg9: memref<1x16x32xf32, #tpu.memory_space<vmem>>, %arg10: memref<1x16x32xbf16, #tpu.memory_space<vmem>>, %arg11: memref<1x16x32xbf16, #tpu.memory_space<vmem>>, %arg12: memref<1x1x16xf32, #tpu.memory_space<vmem>>, %arg13: memref<1x1x16xf32, #tpu.memory_space<vmem>>, %arg14: memref<1x16x1xf32, #tpu.memory_space<vmem>>) attributes {dimension_semantics = [#tpu.dimension_semantics<parallel>, #tpu.dimension_semantics<parallel>], iteration_bounds = array<i64: 2, 1>, scalar_prefetch = 0 : i64, scratch_operands = 0 : i64, tpu.core_type = #tpu.core_type<tc>, window_params = [{transform_indices = @transform_0, window_bounds = array<i64: 1, 16, 32>}, {pipeline_mode = #tpu.pipeline_mode<synchronous>, transform_indices = @transform_1, window_bounds = array<i64: 1, 32>}, {pipeline_mode = #tpu.pipeline_mode<synchronous>, transform_indices = @transform_2, window_bounds = array<i64: 1, 32>}, {pipeline_mode = #tpu.pipeline_mode<synchronous>, transform_indices = @transform_3, window_bounds = array<i64: 1, 32>}, {pipeline_mode = #tpu.pipeline_mode<synchronous>, transform_indices = @transform_4, window_bounds = array<i64: 1, 1>}, {pipeline_mode = #tpu.pipeline_mode<synchronous>, transform_indices = @transform_5, window_bounds = array<i64: 32, 32>}, {pipeline_mode = #tpu.pipeline_mode<synchronous>, transform_indices = @transform_6, window_bounds = array<i64: 32, 32>}, {transform_indices = @transform_7, window_bounds = array<i64: 1, 16, 32>}, {transform_indices = @transform_8, window_bounds = array<i64: 1, 16, 32>}, {transform_indices = @transform_9, window_bounds = array<i64: 1, 16, 32>}, {transform_indices = @transform_10, window_bounds = array<i64: 1, 1, 16>}, {transform_indices = @transform_11, window_bounds = array<i64: 1, 1, 16>}, {transform_indices = @transform_12, window_bounds = array<i64: 1, 16, 1>}]} {
    %c0 = arith.constant 0 : index
    %c0_0 = arith.constant 0 : index
    %c0_1 = arith.constant 0 : index
    %0 = vector.load %arg2[%c0, %c0_0, %c0_1] : memref<1x16x32xf32, #tpu.memory_space<vmem>>, vector<1x16x32xf32>
    %1 = vector.shape_cast %0 : vector<1x16x32xf32> to vector<16x32xf32>
    %c0_2 = arith.constant 0 : index
    %c0_3 = arith.constant 0 : index
    %2 = vector.load %arg3[%c0_2, %c0_3] : memref<1x32xf32, #tpu.memory_space<vmem>>, vector<1x32xf32>
    %c0_4 = arith.constant 0 : index
    %c0_5 = arith.constant 0 : index
    %3 = vector.load %arg4[%c0_4, %c0_5] : memref<1x32xf32, #tpu.memory_space<vmem>>, vector<1x32xf32>
    %cst = arith.constant dense<0.000000e+00> : vector<16xf32>
    %4 = vector.multi_reduction <add>, %1, %cst [1] : vector<16x32xf32> to vector<16xf32>
    %5 = vector.shape_cast %4 : vector<16xf32> to vector<16x1xf32>
    %cst_6 = arith.constant 3.200000e+01 : f32
    %6 = vector.broadcast %cst_6 : f32 to vector<16x1xf32>
    %7 = arith.divf %5, %6 : vector<16x1xf32>
    %8 = vector.broadcast %7 : vector<16x1xf32> to vector<16x32xf32>
    %9 = arith.subf %1, %8 : vector<16x32xf32>
    %10 = arith.mulf %9, %9 : vector<16x32xf32>
    %cst_7 = arith.constant dense<0.000000e+00> : vector<16xf32>
    %11 = vector.multi_reduction <add>, %10, %cst_7 [1] : vector<16x32xf32> to vector<16xf32>
    %12 = vector.shape_cast %11 : vector<16xf32> to vector<16x1xf32>
    %cst_8 = arith.constant 3.200000e+01 : f32
    %13 = vector.broadcast %cst_8 : f32 to vector<16x1xf32>
    %14 = arith.divf %12, %13 : vector<16x1xf32>
    %15 = vector.broadcast %7 : vector<16x1xf32> to vector<16x32xf32>
    %16 = arith.subf %1, %15 : vector<16x32xf32>
    %cst_9 = arith.constant 9.99999974E-6 : f32
    %17 = vector.broadcast %cst_9 : f32 to vector<16x1xf32>
    %18 = arith.addf %14, %17 : vector<16x1xf32>
    %19 = math.rsqrt %18 : vector<16x1xf32>
    %20 = vector.broadcast %19 : vector<16x1xf32> to vector<16x32xf32>
    %21 = arith.mulf %16, %20 : vector<16x32xf32>
    %22 = vector.broadcast %2 : vector<1x32xf32> to vector<16x32xf32>
    %23 = arith.mulf %21, %22 : vector<16x32xf32>
    %24 = vector.broadcast %3 : vector<1x32xf32> to vector<16x32xf32>
    %25 = arith.addf %23, %24 : vector<16x32xf32>
    %c0_10 = arith.constant 0 : index
    %c0_11 = arith.constant 0 : index
    %c0_12 = arith.constant 0 : index
    %26 = vector.load %arg9[%c0_10, %c0_11, %c0_12] : memref<1x16x32xf32, #tpu.memory_space<vmem>>, vector<1x16x32xf32>
    %27 = vector.shape_cast %26 : vector<1x16x32xf32> to vector<16x32xf32>
    %28 = vector.shape_cast %25 : vector<16x32xf32> to vector<1x16x32xf32>
    tpu.vector_store %arg9[%c0_10, %c0_11, %c0_12], %28 {strides = array<i32>} : memref<1x16x32xf32, #tpu.memory_space<vmem>>, vector<1x16x32xf32>,
    %29 = arith.truncf %25 : vector<16x32xf32> to vector<16x32xbf16>
    %c0_13 = arith.constant 0 : index
    %c0_14 = arith.constant 0 : index
    %30 = vector.load %arg7[%c0_13, %c0_14] : memref<32x32xbf16, #tpu.memory_space<vmem>>, vector<32x32xbf16>
    %cst_15 = arith.constant dense<0.000000e+00> : vector<16x32xf32>
    %31 = tpu.matmul %29, %30, %cst_15 {dimension_numbers = #tpu.dot_dimension_numbers<[1], [0], [0], [1], [0, 0, 1, 1], [], []>} : vector<16x32xbf16>, vector<32x32xbf16>, vector<16x32xf32> -> vector<16x32xf32>
    %32 = arith.truncf %31 : vector<16x32xf32> to vector<16x32xbf16>
    %c0_16 = arith.constant 0 : index
    %c0_17 = arith.constant 0 : index
    %c0_18 = arith.constant 0 : index
    %33 = vector.load %arg10[%c0_16, %c0_17, %c0_18] : memref<1x16x32xbf16, #tpu.memory_space<vmem>>, vector<1x16x32xbf16>
    %34 = vector.shape_cast %33 : vector<1x16x32xbf16> to vector<16x32xbf16>
    %35 = vector.shape_cast %32 : vector<16x32xbf16> to vector<1x16x32xbf16>
    tpu.vector_store %arg10[%c0_16, %c0_17, %c0_18], %35 {strides = array<i32>} : memref<1x16x32xbf16, #tpu.memory_space<vmem>>, vector<1x16x32xbf16>,
    %c0_19 = arith.constant 0 : index
    %c0_20 = arith.constant 0 : index
    %36 = vector.load %arg8[%c0_19, %c0_20] : memref<32x32xbf16, #tpu.memory_space<vmem>>, vector<32x32xbf16>
    %cst_21 = arith.constant dense<0.000000e+00> : vector<16x32xf32>
    %37 = tpu.matmul %29, %36, %cst_21 {dimension_numbers = #tpu.dot_dimension_numbers<[1], [0], [0], [1], [0, 0, 1, 1], [], []>} : vector<16x32xbf16>, vector<32x32xbf16>, vector<16x32xf32> -> vector<16x32xf32>
    %38 = arith.truncf %37 : vector<16x32xf32> to vector<16x32xbf16>
    %c0_22 = arith.constant 0 : index
    %c0_23 = arith.constant 0 : index
    %c0_24 = arith.constant 0 : index
    %39 = vector.load %arg11[%c0_22, %c0_23, %c0_24] : memref<1x16x32xbf16, #tpu.memory_space<vmem>>, vector<1x16x32xbf16>
    %40 = vector.shape_cast %39 : vector<1x16x32xbf16> to vector<16x32xbf16>
    %41 = vector.shape_cast %38 : vector<16x32xbf16> to vector<1x16x32xbf16>
    tpu.vector_store %arg11[%c0_22, %c0_23, %c0_24], %41 {strides = array<i32>} : memref<1x16x32xbf16, #tpu.memory_space<vmem>>, vector<1x16x32xbf16>,
    %c0_25 = arith.constant 0 : index
    %c0_26 = arith.constant 0 : index
    %42 = vector.load %arg5[%c0_25, %c0_26] : memref<1x32xf32, #tpu.memory_space<vmem>>, vector<1x32xf32>
    %cst_27 = arith.constant dense<0.000000e+00> : vector<1x16xf32>
    %43 = tpu.matmul %42, %25, %cst_27 {dimension_numbers = #tpu.dot_dimension_numbers<[1], [1], [0], [0], [0, 0, 1, 0], [], []>} : vector<1x32xf32>, vector<16x32xf32>, vector<1x16xf32> -> vector<1x16xf32>
    %c0_28 = arith.constant 0 : index
    %c0_29 = arith.constant 0 : index
    %44 = vector.load %arg6[%c0_28, %c0_29] : memref<1x1xf32, #tpu.memory_space<vmem>>, vector<1x1xf32>
    %45 = vector.broadcast %44 : vector<1x1xf32> to vector<1x16xf32>
    %46 = arith.addf %43, %45 : vector<1x16xf32>
    %c0_30 = arith.constant 0 : index
    %c0_31 = arith.constant 0 : index
    %c0_32 = arith.constant 0 : index
    %47 = vector.load %arg12[%c0_30, %c0_31, %c0_32] : memref<1x1x16xf32, #tpu.memory_space<vmem>>, vector<1x1x16xf32>
    %48 = vector.shape_cast %47 : vector<1x1x16xf32> to vector<1x16xf32>
    %49 = vector.shape_cast %46 : vector<1x16xf32> to vector<1x1x16xf32>
    tpu.vector_store %arg12[%c0_30, %c0_31, %c0_32], %49 {strides = array<i32>} : memref<1x1x16xf32, #tpu.memory_space<vmem>>, vector<1x1x16xf32>,
    %50 = arith.mulf %25, %25 : vector<16x32xf32>
    %cst_33 = arith.constant dense<0.000000e+00> : vector<16xf32>
    %51 = vector.multi_reduction <add>, %50, %cst_33 [1] : vector<16x32xf32> to vector<16xf32>
    %52 = vector.shape_cast %51 : vector<16xf32> to vector<16x1xf32>
    %c0_34 = arith.constant 0 : index
    %c0_35 = arith.constant 0 : index
    %c0_36 = arith.constant 0 : index
    %53 = vector.load %arg14[%c0_34, %c0_35, %c0_36] : memref<1x16x1xf32, #tpu.memory_space<vmem>>, vector<1x16x1xf32>
    %54 = vector.shape_cast %53 : vector<1x16x1xf32> to vector<16x1xf32>
    %55 = vector.shape_cast %52 : vector<16x1xf32> to vector<1x16x1xf32>
    tpu.vector_store %arg14[%c0_34, %c0_35, %c0_36], %55 {strides = array<i32>} : memref<1x16x1xf32, #tpu.memory_space<vmem>>, vector<1x16x1xf32>,
    %cst_37 = arith.constant 1.000000e+00 : f32
    %56 = vector.broadcast %cst_37 : f32 to vector<1x32xf32>
    %cst_38 = arith.constant dense<0.000000e+00> : vector<1x16xf32>
    %57 = tpu.matmul %56, %50, %cst_38 {dimension_numbers = #tpu.dot_dimension_numbers<[1], [1], [0], [0], [0, 0, 1, 0], [], []>} : vector<1x32xf32>, vector<16x32xf32>, vector<1x16xf32> -> vector<1x16xf32>
    %c0_39 = arith.constant 0 : index
    %c0_40 = arith.constant 0 : index
    %c0_41 = arith.constant 0 : index
    %58 = vector.load %arg13[%c0_39, %c0_40, %c0_41] : memref<1x1x16xf32, #tpu.memory_space<vmem>>, vector<1x1x16xf32>
    %59 = vector.shape_cast %58 : vector<1x1x16xf32> to vector<1x16xf32>
    %60 = vector.shape_cast %57 : vector<1x16xf32> to vector<1x1x16xf32>
    tpu.vector_store %arg13[%c0_39, %c0_40, %c0_41], %60 {strides = array<i32>} : memref<1x1x16xf32, #tpu.memory_space<vmem>>, vector<1x1x16xf32>,
    return
  }
  func.func @transform_0(%arg0: i32, %arg1: i32) -> (i32, i32, i32) {
    %c0_i32 = arith.constant 0 : i32
    %c0_i32_0 = arith.constant 0 : i32
    return %arg0, %arg1, %c0_i32 : i32, i32, i32
  }
  func.func @transform_1(%arg0: i32, %arg1: i32) -> (i32, i32) {
    %c0_i32 = arith.constant 0 : i32
    %c0_i32_0 = arith.constant 0 : i32
    %c0_i32_1 = arith.constant 0 : i32
    return %c0_i32, %c0_i32_0 : i32, i32
  }
  func.func @transform_2(%arg0: i32, %arg1: i32) -> (i32, i32) {
    %c0_i32 = arith.constant 0 : i32
    %c0_i32_0 = arith.constant 0 : i32
    %c0_i32_1 = arith.constant 0 : i32
    return %c0_i32, %c0_i32_0 : i32, i32
  }
  func.func @transform_3(%arg0: i32, %arg1: i32) -> (i32, i32) {
    %c0_i32 = arith.constant 0 : i32
    %c0_i32_0 = arith.constant 0 : i32
    %c0_i32_1 = arith.constant 0 : i32
    return %c0_i32, %c0_i32_0 : i32, i32
  }
  func.func @transform_4(%arg0: i32, %arg1: i32) -> (i32, i32) {
    %c0_i32 = arith.constant 0 : i32
    %c0_i32_0 = arith.constant 0 : i32
    %c0_i32_1 = arith.constant 0 : i32
    return %c0_i32, %c0_i32_0 : i32, i32
  }
  func.func @transform_5(%arg0: i32, %arg1: i32) -> (i32, i32) {
    %c0_i32 = arith.constant 0 : i32
    %c0_i32_0 = arith.constant 0 : i32
    %c0_i32_1 = arith.constant 0 : i32
    return %c0_i32, %c0_i32_0 : i32, i32
  }
  func.func @transform_6(%arg0: i32, %arg1: i32) -> (i32, i32) {
    %c0_i32 = arith.constant 0 : i32
    %c0_i32_0 = arith.constant 0 : i32
    %c0_i32_1 = arith.constant 0 : i32
    return %c0_i32, %c0_i32_0 : i32, i32
  }
  func.func @transform_7(%arg0: i32, %arg1: i32) -> (i32, i32, i32) {
    %c0_i32 = arith.constant 0 : i32
    %c0_i32_0 = arith.constant 0 : i32
    return %arg0, %arg1, %c0_i32 : i32, i32, i32
  }
  func.func @transform_8(%arg0: i32, %arg1: i32) -> (i32, i32, i32) {
    %c0_i32 = arith.constant 0 : i32
    %c0_i32_0 = arith.constant 0 : i32
    return %arg0, %arg1, %c0_i32 : i32, i32, i32
  }
  func.func @transform_9(%arg0: i32, %arg1: i32) -> (i32, i32, i32) {
    %c0_i32 = arith.constant 0 : i32
    %c0_i32_0 = arith.constant 0 : i32
    return %arg0, %arg1, %c0_i32 : i32, i32, i32
  }
  func.func @transform_10(%arg0: i32, %arg1: i32) -> (i32, i32, i32) {
    %c0_i32 = arith.constant 0 : i32
    %c0_i32_0 = arith.constant 0 : i32
    return %arg0, %c0_i32, %arg1 : i32, i32, i32
  }
  func.func @transform_11(%arg0: i32, %arg1: i32) -> (i32, i32, i32) {
    %c0_i32 = arith.constant 0 : i32
    %c0_i32_0 = arith.constant 0 : i32
    return %arg0, %c0_i32, %arg1 : i32, i32, i32
  }
  func.func @transform_12(%arg0: i32, %arg1: i32) -> (i32, i32, i32) {
    %c0_i32 = arith.constant 0 : i32
    %c0_i32_0 = arith.constant 0 : i32
    return %arg0, %arg1, %c0_i32 : i32, i32, i32
  }
}

</mosaic_0001>

<llo_original>
// kernel: tpu_custom_call.1
$region0: #{tpu_custom_call.1}
  #allocation0 [shape = 'u32[]', space=smem, size = 0x4, offset = 0x4, fixed_abs, tag = 'smem constant byte address 0x4 - core index']
  #allocation1 [shape = 'u32[144,128]{1,0:T(1,128)}', space=vmem, size = 0x12000, scoped, tag = 'internal scratch']
  %s0 = inlined_call_operand.hbm [shape: f32[8,128], index: 0, kind: input, shape index: {}]
  %s1 = inlined_call_operand.hbm [shape: f32[16,128], index: 1, kind: output, shape index: {}]
  %s2 = sld [smem:[#allocation0]]
  $region41: #{tpu_custom_call.1} parent=0
    _
  %s4 = ssub.s32 1, %s2
  %s5 = scalar_select 0, %s4, %s2
  $region1: #{tpu_custom_call.1} parent=0
    #allocation2 [shape = 'u8[4096]{0}', space=vmem, size = 0x1000, scoped, tag = 'input window, operand 0, single buffered']
    #allocation3 [shape = 's32[2]{0}', space=sflag, size = 0x8, scoped, tag = 'scoped memory for tpu_custom_call.1']
    #allocation4 [shape = 's32[2]{0}', space=sflag, size = 0x8, scoped, tag = 'scoped memory for tpu_custom_call.1']
    #allocation5 [shape = 'u8[8192]{0}', space=vmem, size = 0x2000, scoped, tag = 'output window, operand 0']
    %6 = vsyncpa [#allocation3], 0
    %7 = vsyncpa [#allocation4], 0
    %s8 = scalar_lea.sflag [#allocation4], 1
    %9 = vsyncpa %s8, 0
    loop: start=0, step=1, limit=4
    $region2: #{tpu_custom_call.1} parent=1 // loop_pre_header
      _
    $region3: #{tpu_custom_call.1} parent=1 // loop_header
      %s11 = sphi 0, %s15
      %p12 = scmp.ge.s32.totalorder %s11, 4
      %s19 = sphi 0, %s19
      %s21 = sphi 0, %s19
      %s22 = sphi 0, %s21
      %s36 = sphi 0, %s22
      %s42 = sphi 0, %s44
      %s45 = sphi 0, %s42
      %s46 = sphi 0, %s45
      %s62 = sphi 0, %s46
    $region4: #{tpu_custom_call.1} parent=1 // loop_header_branch
      %14 = sbr.rel (%p12) target = $region8
    $region5: #{tpu_custom_call.1} parent=1 // loop_body
      %s16 = ssub.s32 %s11, 1
      %s17 = ssub.s32 %s11, 2
      %s18 = sadd.s32 %s11, 1
      %s20 = sadd.s32 %s19, 1
      %p23 = scmp.eq.s32.totalorder %s11, 1
      %p24 = scmp.ne.s32.totalorder %s19, %s21
      %p25 = scmp.eq.s32.totalorder %s11, 0
      %p26 = por %p24, %p25
      %p27 = scmp.ne.s32.totalorder %s19, %s21
      %p28 = scmp.eq.s32.totalorder %s16, 1
      %p29 = por %p27, %p28
      %p30 = scmp.ne.s32.totalorder %s21, %s22
      %p31 = scmp.eq.s32.totalorder %s16, 0
      %p32 = por %p30, %p31
      %p33 = scmp.ne.s32.totalorder %s21, %s22
      %p34 = scmp.eq.s32.totalorder %s17, 1
      %p35 = por %p33, %p34
      %p37 = scmp.ne.s32.totalorder %s22, %s36
      %p38 = scmp.eq.s32.totalorder %s17, 0
      %p39 = por %p37, %p38
      %s40 = ssub.s32 %s11, %s18
      %p41 = scmp.eq.s32.totalorder %s40, 0
      %s43 = sadd.s32 %s42, 1
      %s44 = scalar_select %p41, %s42, %s43
      %p47 = pneg %p41
      %p48 = scmp.eq.s32.totalorder %s11, 1
      %p49 = por %p47, %p48
      %p50 = scmp.ne.s32.totalorder %s42, %s45
      %p51 = scmp.eq.s32.totalorder %s11, 0
      %p52 = por %p50, %p51
      %p53 = scmp.ne.s32.totalorder %s42, %s45
      %p54 = scmp.eq.s32.totalorder %s16, 1
      %p55 = por %p53, %p54
      %p56 = scmp.ne.s32.totalorder %s45, %s46
      %p57 = scmp.eq.s32.totalorder %s16, 0
      %p58 = por %p56, %p57
      %p59 = scmp.ne.s32.totalorder %s45, %s46
      %p60 = scmp.eq.s32.totalorder %s17, 1
      %p61 = por %p59, %p60
      %p63 = scmp.ne.s32.totalorder %s46, %s62
      %p64 = scmp.eq.s32.totalorder %s17, 0
      %p65 = por %p63, %p64
      %p66 = scmp.le.s32.totalorder 1, %s11
      %p67 = scmp.lt.s32.totalorder %s11, 3
      %p68 = pnand %p66, %p67
      %p69 = pneg %p68
      // Predicated region
      $region9: #{tpu_custom_call.1} parent=5 // pred_check
        _
      $region10: #{tpu_custom_call.1} parent=5 // pred_check_branch
        %71 = sbr.rel (%p68) target = $region12
      $region11: #{tpu_custom_call.1} parent=5 // pred_region
        %s72 = ssub.s32 %s11, 1
        // Predicated region
        $region13: #{tpu_custom_call.1} parent=11 // pred_check
          %p73 = pneg %p32
        $region14: #{tpu_custom_call.1} parent=11 // pred_check_branch
          %75 = sbr.rel (%p73) target = $region16
        $region15: #{tpu_custom_call.1} parent=11 // pred_region
          %s77 = ssub.s32 128, 128
          %78 = vsyncadd [#allocation3], %s77
          %s80 = sshll.u32 [#allocation2], 4
          %s81 = int_to_ptr.vmem [resolvable:$true] %s80
          %83 = dma.hbm_to_vmem [thread:$0]  %s0, 128, %s81, [#allocation3]
        $region16: #{tpu_custom_call.1} parent=11 // pred_fallthru
          _
      $region12: #{tpu_custom_call.1} parent=5 // pred_fallthru
        _
      %p84 = scmp.lt.s32.totalorder %s11, 2
      // Predicated region
      $region17: #{tpu_custom_call.1} parent=5 // pred_check
        %p85 = pneg %p84
      $region18: #{tpu_custom_call.1} parent=5 // pred_check_branch
        %87 = sbr.rel (%p85) target = $region20
      $region19: #{tpu_custom_call.1} parent=5 // pred_region
        _
      $region20: #{tpu_custom_call.1} parent=5 // pred_fallthru
        _
      %p88 = scmp.le.s32.totalorder 1, %s11
      %p89 = scmp.lt.s32.totalorder %s11, 3
      %p90 = pnand %p88, %p89
      %p91 = pneg %p90
      // Predicated region
      $region21: #{tpu_custom_call.1} parent=5 // pred_check
        _
      $region22: #{tpu_custom_call.1} parent=5 // pred_check_branch
        %93 = sbr.rel (%p90) target = $region24
      $region23: #{tpu_custom_call.1} parent=5 // pred_region
        %s94 = ssub.s32 %s11, 1
        // Predicated region
        $region25: #{tpu_custom_call.1} parent=23 // pred_check
          %p95 = pneg %p32
        $region26: #{tpu_custom_call.1} parent=23 // pred_check_branch
          %97 = sbr.rel (%p95) target = $region28
        $region27: #{tpu_custom_call.1} parent=23 // pred_region
          %98 = dma.done [#allocation3], 128
        $region28: #{tpu_custom_call.1} parent=23 // pred_fallthru
          _
        %p99 = pneg %p32
        %p100 = pneg %p29
        %p101 = pneg %p58
        %p102 = pneg %p55
        %s103 = sand.u32 %s45, 1
        %s104 = scalar_lea.sflag [#allocation4], %s103
        %s105 = sand.u32 %s45, 1
        %s106 = smul.addr %s105, 8
        %s107 = scalar_lea.vmem [#allocation5], %s106
        %v108 = vld [vmem:[#allocation2] sm:$0xff]
        %v109 = vadd.f32 %v108, 1.0
        %110 = vst [vmem:[%s107] sm:$0xff] %v109
        %s111 = sand.u32 %s45, 1
        %s112 = scalar_lea.sflag [#allocation4], %s111
        %s113 = sand.u32 %s45, 1
        %s114 = smul.addr %s113, 8
        %s115 = scalar_lea.vmem [#allocation5], %s114
        // Predicated region
        $region29: #{tpu_custom_call.1} parent=23 // pred_check
          %p116 = pneg %p55
        $region30: #{tpu_custom_call.1} parent=23 // pred_check_branch
          %118 = sbr.rel (%p116) target = $region32
        $region31: #{tpu_custom_call.1} parent=23 // pred_region
          %s120 = ssub.s32 128, 128
          %121 = vsyncadd %s112, %s120
          %s122 = smul.addr %s16, 128
          %s123 = scalar_lea.hbm %s1, %s122
          %s125 = sshll.u32 %s115, 4
          %s126 = int_to_ptr.vmem [resolvable:$true] %s125
          %128 = dma.vmem_to_hbm [thread:$0]  %s126, 128, %s123, %s112
        $region32: #{tpu_custom_call.1} parent=23 // pred_fallthru
          _
      $region24: #{tpu_custom_call.1} parent=5 // pred_fallthru
        _
      %p129 = scmp.le.s32.totalorder 2, %s11
      // Predicated region
      $region33: #{tpu_custom_call.1} parent=5 // pred_check
        %p130 = pneg %p129
      $region34: #{tpu_custom_call.1} parent=5 // pred_check_branch
        %132 = sbr.rel (%p130) target = $region36
      $region35: #{tpu_custom_call.1} parent=5 // pred_region
        %s133 = ssub.s32 %s11, 2
        // Predicated region
        $region37: #{tpu_custom_call.1} parent=35 // pred_check
          %p134 = pneg %p61
        $region38: #{tpu_custom_call.1} parent=35 // pred_check_branch
          %136 = sbr.rel (%p134) target = $region40
        $region39: #{tpu_custom_call.1} parent=35 // pred_region
          %s137 = sand.u32 %s46, 1
          %s138 = scalar_lea.sflag [#allocation4], %s137
          %s139 = sand.u32 %s46, 1
          %s140 = smul.addr %s139, 8
          %s141 = scalar_lea.vmem [#allocation5], %s140
          %142 = dma.done %s138, 128
        $region40: #{tpu_custom_call.1} parent=35 // pred_fallthru
          _
      $region36: #{tpu_custom_call.1} parent=5 // pred_fallthru
        _
    $region6: #{tpu_custom_call.1} parent=1 // loop_footer
      %s15 = sadd.s32 1, %s11
    $region7: #{tpu_custom_call.1} parent=1 // loop_footer_branch
      %10 = sbr.rel target = $region3
    $region8: #{tpu_custom_call.1} parent=1 // loop_exit
      _
    %143 = vsyncpa [#allocation3], 1
    %s144 = scalar_lea.sflag [#allocation3], 1
    %145 = vsyncpa %s144, 1
    %146 = vsyncpa [#allocation4], 1
    %s147 = scalar_lea.sflag [#allocation4], 1
    %148 = vsyncpa %s147, 1

// kernel: tpu_custom_call.1
$region0: #{tpu_custom_call.1}
  #allocation0 [shape = 'u32[]', space=smem, size = 0x4, offset = 0x4, fixed_abs, tag = 'smem constant byte address 0x4 - core index']
  #allocation1 [shape = 'u32[144,128]{1,0:T(1,128)}', space=vmem, size = 0x12000, scoped, tag = 'internal scratch']
  #allocation2 [shape = 'f32[1,1]{1,0:T(1,128)S(1)}', space=vmem, size = 0x200, scoped, tag = 'scoped memory for tpu_custom_call.1']
  %s0 = inlined_call_operand.hbm [shape: f32[2,16,32], index: 0, kind: input, shape index: {}]
  %s1 = inlined_call_operand.vmem [shape: f32[1,32], index: 1, kind: input, shape index: {}]
  %s2 = inlined_call_operand.vmem [shape: f32[1,32], index: 2, kind: input, shape index: {}]
  %s3 = inlined_call_operand.vmem [shape: f32[1,32], index: 3, kind: input, shape index: {}]
  %s4 = inlined_call_operand.<no memory space> [shape: f32[1,1], index: 4, kind: input, shape index: {}]
  %s5 = inlined_call_operand.hbm [shape: bf16[32,32], index: 5, kind: input, shape index: {}]
  %s6 = inlined_call_operand.hbm [shape: bf16[32,32], index: 6, kind: input, shape index: {}]
  %s7 = inlined_call_operand.hbm [shape: f32[2,16,32], index: 7, kind: output, shape index: {0}]
  %s8 = inlined_call_operand.hbm [shape: bf16[2,16,32], index: 8, kind: output, shape index: {1}]
  %s9 = inlined_call_operand.hbm [shape: bf16[2,16,32], index: 9, kind: output, shape index: {2}]
  %s10 = inlined_call_operand.hbm [shape: f32[2,1,16], index: 10, kind: output, shape index: {3}]
  %s11 = inlined_call_operand.hbm [shape: f32[2,1,16], index: 11, kind: output, shape index: {4}]
  %s12 = inlined_call_operand.vmem [shape: f32[2,16,1], index: 12, kind: output, shape index: {5}]
  %13 = xla_tuple %s7, %s8, %s9, %s10, %s11, %s12
  %s14 = sld [smem:[#allocation0]]
  $region113: #{tpu_custom_call.1} parent=0
    _
  %s16 = ssub.s32 1, %s14
  %s17 = scalar_select 0, %s16, %s14
  %v18 = vstv %s4
  %19 = vst [vmem:[#allocation2] sm:$0x1] %v18
  $region1: #{tpu_custom_call.1} parent=0
    #allocation3 [shape = 'u8[16384]{0}', space=vmem, size = 0x4000, scoped, tag = 'input window, operand 0']
    #allocation4 [shape = 's32[2]{0}', space=sflag, size = 0x8, scoped, tag = 'scoped memory for tpu_custom_call.1']
    #allocation5 [shape = 's32[2]{0}', space=sflag, size = 0x8, scoped, tag = 'scoped memory for tpu_custom_call.1']
    #allocation6 [shape = 'u8[8192]{0}', space=vmem, size = 0x2000, scoped, tag = 'input window, operand 5, single buffered']
    #allocation7 [shape = 's32[1]{0}', space=sflag, size = 0x4, scoped, tag = 'scoped memory for tpu_custom_call.1']
    #allocation8 [shape = 'u8[8192]{0}', space=vmem, size = 0x2000, scoped, tag = 'input window, operand 6, single buffered']
    #allocation9 [shape = 'u8[16384]{0}', space=vmem, size = 0x4000, scoped, tag = 'output window, operand 0']
    #allocation10 [shape = 'u8[8192]{0}', space=vmem, size = 0x2000, scoped, tag = 'output window, operand 1']
    #allocation11 [shape = 's32[2]{0}', space=sflag, size = 0x8, scoped, tag = 'scoped memory for tpu_custom_call.1']
    #allocation12 [shape = 'u8[8192]{0}', space=vmem, size = 0x2000, scoped, tag = 'output window, operand 2']
    #allocation13 [shape = 'u8[1024]{0}', space=vmem, size = 0x400, scoped, tag = 'output window, operand 3']
    #allocation14 [shape = 's32[2]{0}', space=sflag, size = 0x8, scoped, tag = 'scoped memory for tpu_custom_call.1']
    #allocation15 [shape = 'u8[1024]{0}', space=vmem, size = 0x400, scoped, tag = 'output window, operand 4']
    %20 = vsyncpa [#allocation4], 0
    %s21 = scalar_lea.sflag [#allocation4], 1
    %22 = vsyncpa %s21, 0
    %23 = vsyncpa [#allocation7], 0
    %24 = vsyncpa [#allocation5], 0
    %s25 = scalar_lea.sflag [#allocation5], 1
    %26 = vsyncpa %s25, 0
    %27 = vsyncpa [#allocation11], 0
    %s28 = scalar_lea.sflag [#allocation11], 1
    %29 = vsyncpa %s28, 0
    %30 = vsyncpa [#allocation14], 0
    %s31 = scalar_lea.sflag [#allocation14], 1
    %32 = vsyncpa %s31, 0
    loop: start=0, step=1, limit=4
    $region2: #{tpu_custom_call.1} parent=1 // loop_pre_header
      _
    $region3: #{tpu_custom_call.1} parent=1 // loop_header
      %s34 = sphi 0, %s38
      %p35 = scmp.ge.s32.totalorder %s34, 4
      %s41 = sphi 0, %s53
      %s42 = sphi 0, %s49
      %s43 = sphi 0, %s41
      %s44 = sphi 0, %s42
      %s45 = sphi 0, %s43
      %s46 = sphi 0, %s44
      %s58 = sphi 0, %s60
      %s61 = sphi 0, %s58
      %s62 = sphi 0, %s61
      %s78 = sphi 0, %s62
      %s82 = sphi 0, %s82
      %s84 = sphi 0, %s82
      %s85 = sphi 0, %s84
      %s99 = sphi 0, %s85
      %s103 = sphi 0, %s103
      %s105 = sphi 0, %s103
      %s106 = sphi 0, %s105
      %s120 = sphi 0, %s106
      %s124 = sphi 0, %s124
      %s126 = sphi 0, %s124
      %s127 = sphi 0, %s126
      %s141 = sphi 0, %s127
      %s145 = sphi 0, %s145
      %s147 = sphi 0, %s145
      %s148 = sphi 0, %s147
      %s162 = sphi 0, %s148
      %s166 = sphi 0, %s166
      %s168 = sphi 0, %s166
      %s169 = sphi 0, %s168
      %s183 = sphi 0, %s169
      %s187 = sphi 0, %s187
      %s189 = sphi 0, %s187
      %s190 = sphi 0, %s189
      %s204 = sphi 0, %s190
      %s212 = sphi 0, %s214
      %s215 = sphi 0, %s212
      %s216 = sphi 0, %s215
      %s232 = sphi 0, %s216
      %s240 = sphi 0, %s242
      %s243 = sphi 0, %s240
      %s244 = sphi 0, %s243
      %s260 = sphi 0, %s244
      %s268 = sphi 0, %s270
      %s271 = sphi 0, %s268
      %s272 = sphi 0, %s271
      %s288 = sphi 0, %s272
      %s296 = sphi 0, %s298
      %s299 = sphi 0, %s296
      %s300 = sphi 0, %s299
      %s316 = sphi 0, %s300
      %s324 = sphi 0, %s326
      %s327 = sphi 0, %s324
      %s328 = sphi 0, %s327
      %s344 = sphi 0, %s328
      %s352 = sphi 0, %s354
      %s355 = sphi 0, %s352
      %s356 = sphi 0, %s355
      %s372 = sphi 0, %s356
    $region4: #{tpu_custom_call.1} parent=1 // loop_header_branch
      %37 = sbr.rel (%p35) target = $region8
    $region5: #{tpu_custom_call.1} parent=1 // loop_body
      %s39 = ssub.s32 %s34, 1
      %s40 = ssub.s32 %s34, 2
      %s47 = sadd.s32 1, %s42
      %p48 = scmp.ge.s32.totalorder %s47, 1
      %s49 = scalar_select %p48, 0, %s47
      %s50 = sadd.s32 1, %s41
      %s51 = scalar_select %p48, %s50, %s41
      %p52 = scmp.ge.s32.totalorder %s51, 2
      %s53 = scalar_select %p52, 0, %s51
      %s54 = ssub.s32 %s41, %s53
      %s55 = ssub.s32 %s42, %s49
      %s56 = sor.u32 %s54, %s55
      %p57 = scmp.eq.s32.totalorder %s56, 0
      %s59 = sadd.s32 %s58, 1
      %s60 = scalar_select %p57, %s58, %s59
      %p63 = pneg %p57
      %p64 = scmp.eq.s32.totalorder %s34, 1
      %p65 = por %p63, %p64
      %p66 = scmp.ne.s32.totalorder %s58, %s61
      %p67 = scmp.eq.s32.totalorder %s34, 0
      %p68 = por %p66, %p67
      %p69 = scmp.ne.s32.totalorder %s58, %s61
      %p70 = scmp.eq.s32.totalorder %s39, 1
      %p71 = por %p69, %p70
      %p72 = scmp.ne.s32.totalorder %s61, %s62
      %p73 = scmp.eq.s32.totalorder %s39, 0
      %p74 = por %p72, %p73
      %p75 = scmp.ne.s32.totalorder %s61, %s62
      %p76 = scmp.eq.s32.totalorder %s40, 1
      %p77 = por %p75, %p76
      %p79 = scmp.ne.s32.totalorder %s62, %s78
      %p80 = scmp.eq.s32.totalorder %s40, 0
      %p81 = por %p79, %p80
      %s83 = sadd.s32 %s82, 1
      %p86 = scmp.eq.s32.totalorder %s34, 1
      %p87 = scmp.ne.s32.totalorder %s82, %s84
      %p88 = scmp.eq.s32.totalorder %s34, 0
      %p89 = por %p87, %p88
      %p90 = scmp.ne.s32.totalorder %s82, %s84
      %p91 = scmp.eq.s32.totalorder %s39, 1
      %p92 = por %p90, %p91
      %p93 = scmp.ne.s32.totalorder %s84, %s85
      %p94 = scmp.eq.s32.totalorder %s39, 0
      %p95 = por %p93, %p94
      %p96 = scmp.ne.s32.totalorder %s84, %s85
      %p97 = scmp.eq.s32.totalorder %s40, 1
      %p98 = por %p96, %p97
      %p100 = scmp.ne.s32.totalorder %s85, %s99
      %p101 = scmp.eq.s32.totalorder %s40, 0
      %p102 = por %p100, %p101
      %s104 = sadd.s32 %s103, 1
      %p107 = scmp.eq.s32.totalorder %s34, 1
      %p108 = scmp.ne.s32.totalorder %s103, %s105
      %p109 = scmp.eq.s32.totalorder %s34, 0
      %p110 = por %p108, %p109
      %p111 = scmp.ne.s32.totalorder %s103, %s105
      %p112 = scmp.eq.s32.totalorder %s39, 1
      %p113 = por %p111, %p112
      %p114 = scmp.ne.s32.totalorder %s105, %s106
      %p115 = scmp.eq.s32.totalorder %s39, 0
      %p116 = por %p114, %p115
      %p117 = scmp.ne.s32.totalorder %s105, %s106
      %p118 = scmp.eq.s32.totalorder %s40, 1
      %p119 = por %p117, %p118
      %p121 = scmp.ne.s32.totalorder %s106, %s120
      %p122 = scmp.eq.s32.totalorder %s40, 0
      %p123 = por %p121, %p122
      %s125 = sadd.s32 %s124, 1
      %p128 = scmp.eq.s32.totalorder %s34, 1
      %p129 = scmp.ne.s32.totalorder %s124, %s126
      %p130 = scmp.eq.s32.totalorder %s34, 0
      %p131 = por %p129, %p130
      %p132 = scmp.ne.s32.totalorder %s124, %s126
      %p133 = scmp.eq.s32.totalorder %s39, 1
      %p134 = por %p132, %p133
      %p135 = scmp.ne.s32.totalorder %s126, %s127
      %p136 = scmp.eq.s32.totalorder %s39, 0
      %p137 = por %p135, %p136
      %p138 = scmp.ne.s32.totalorder %s126, %s127
      %p139 = scmp.eq.s32.totalorder %s40, 1
      %p140 = por %p138, %p139
      %p142 = scmp.ne.s32.totalorder %s127, %s141
      %p143 = scmp.eq.s32.totalorder %s40, 0
      %p144 = por %p142, %p143
      %s146 = sadd.s32 %s145, 1
      %p149 = scmp.eq.s32.totalorder %s34, 1
      %p150 = scmp.ne.s32.totalorder %s145, %s147
      %p151 = scmp.eq.s32.totalorder %s34, 0
      %p152 = por %p150, %p151
      %p153 = scmp.ne.s32.totalorder %s145, %s147
      %p154 = scmp.eq.s32.totalorder %s39, 1
      %p155 = por %p153, %p154
      %p156 = scmp.ne.s32.totalorder %s147, %s148
      %p157 = scmp.eq.s32.totalorder %s39, 0
      %p158 = por %p156, %p157
      %p159 = scmp.ne.s32.totalorder %s147, %s148
      %p160 = scmp.eq.s32.totalorder %s40, 1
      %p161 = por %p159, %p160
      %p163 = scmp.ne.s32.totalorder %s148, %s162
      %p164 = scmp.eq.s32.totalorder %s40, 0
      %p165 = por %p163, %p164
      %s167 = sadd.s32 %s166, 1
      %p170 = scmp.eq.s32.totalorder %s34, 1
      %p171 = scmp.ne.s32.totalorder %s166, %s168
      %p172 = scmp.eq.s32.totalorder %s34, 0
      %p173 = por %p171, %p172
      %p174 = scmp.ne.s32.totalorder %s166, %s168
      %p175 = scmp.eq.s32.totalorder %s39, 1
      %p176 = por %p174, %p175
      %p177 = scmp.ne.s32.totalorder %s168, %s169
      %p178 = scmp.eq.s32.totalorder %s39, 0
      %p179 = por %p177, %p178
      %p180 = scmp.ne.s32.totalorder %s168, %s169
      %p181 = scmp.eq.s32.totalorder %s40, 1
      %p182 = por %p180, %p181
      %p184 = scmp.ne.s32.totalorder %s169, %s183
      %p185 = scmp.eq.s32.totalorder %s40, 0
      %p186 = por %p184, %p185
      %s188 = sadd.s32 %s187, 1
      %p191 = scmp.eq.s32.totalorder %s34, 1
      %p192 = scmp.ne.s32.totalorder %s187, %s189
      %p193 = scmp.eq.s32.totalorder %s34, 0
      %p194 = por %p192, %p193
      %p195 = scmp.ne.s32.totalorder %s187, %s189
      %p196 = scmp.eq.s32.totalorder %s39, 1
      %p197 = por %p195, %p196
      %p198 = scmp.ne.s32.totalorder %s189, %s190
      %p199 = scmp.eq.s32.totalorder %s39, 0
      %p200 = por %p198, %p199
      %p201 = scmp.ne.s32.totalorder %s189, %s190
      %p202 = scmp.eq.s32.totalorder %s40, 1
      %p203 = por %p201, %p202
      %p205 = scmp.ne.s32.totalorder %s190, %s204
      %p206 = scmp.eq.s32.totalorder %s40, 0
      %p207 = por %p205, %p206
      %s208 = ssub.s32 %s41, %s53
      %s209 = ssub.s32 %s42, %s49
      %s210 = sor.u32 %s208, %s209
      %p211 = scmp.eq.s32.totalorder %s210, 0
      %s213 = sadd.s32 %s212, 1
      %s214 = scalar_select %p211, %s212, %s213
      %p217 = pneg %p211
      %p218 = scmp.eq.s32.totalorder %s34, 1
      %p219 = por %p217, %p218
      %p220 = scmp.ne.s32.totalorder %s212, %s215
      %p221 = scmp.eq.s32.totalorder %s34, 0
      %p222 = por %p220, %p221
      %p223 = scmp.ne.s32.totalorder %s212, %s215
      %p224 = scmp.eq.s32.totalorder %s39, 1
      %p225 = por %p223, %p224
      %p226 = scmp.ne.s32.totalorder %s215, %s216
      %p227 = scmp.eq.s32.totalorder %s39, 0
      %p228 = por %p226, %p227
      %p229 = scmp.ne.s32.totalorder %s215, %s216
      %p230 = scmp.eq.s32.totalorder %s40, 1
      %p231 = por %p229, %p230
      %p233 = scmp.ne.s32.totalorder %s216, %s232
      %p234 = scmp.eq.s32.totalorder %s40, 0
      %p235 = por %p233, %p234
      %s236 = ssub.s32 %s41, %s53
      %s237 = ssub.s32 %s42, %s49
      %s238 = sor.u32 %s236, %s237
      %p239 = scmp.eq.s32.totalorder %s238, 0
      %s241 = sadd.s32 %s240, 1
      %s242 = scalar_select %p239, %s240, %s241
      %p245 = pneg %p239
      %p246 = scmp.eq.s32.totalorder %s34, 1
      %p247 = por %p245, %p246
      %p248 = scmp.ne.s32.totalorder %s240, %s243
      %p249 = scmp.eq.s32.totalorder %s34, 0
      %p250 = por %p248, %p249
      %p251 = scmp.ne.s32.totalorder %s240, %s243
      %p252 = scmp.eq.s32.totalorder %s39, 1
      %p253 = por %p251, %p252
      %p254 = scmp.ne.s32.totalorder %s243, %s244
      %p255 = scmp.eq.s32.totalorder %s39, 0
      %p256 = por %p254, %p255
      %p257 = scmp.ne.s32.totalorder %s243, %s244
      %p258 = scmp.eq.s32.totalorder %s40, 1
      %p259 = por %p257, %p258
      %p261 = scmp.ne.s32.totalorder %s244, %s260
      %p262 = scmp.eq.s32.totalorder %s40, 0
      %p263 = por %p261, %p262
      %s264 = ssub.s32 %s41, %s53
      %s265 = ssub.s32 %s42, %s49
      %s266 = sor.u32 %s264, %s265
      %p267 = scmp.eq.s32.totalorder %s266, 0
      %s269 = sadd.s32 %s268, 1
      %s270 = scalar_select %p267, %s268, %s269
      %p273 = pneg %p267
      %p274 = scmp.eq.s32.totalorder %s34, 1
      %p275 = por %p273, %p274
      %p276 = scmp.ne.s32.totalorder %s268, %s271
      %p277 = scmp.eq.s32.totalorder %s34, 0
      %p278 = por %p276, %p277
      %p279 = scmp.ne.s32.totalorder %s268, %s271
      %p280 = scmp.eq.s32.totalorder %s39, 1
      %p281 = por %p279, %p280
      %p282 = scmp.ne.s32.totalorder %s271, %s272
      %p283 = scmp.eq.s32.totalorder %s39, 0
      %p284 = por %p282, %p283
      %p285 = scmp.ne.s32.totalorder %s271, %s272
      %p286 = scmp.eq.s32.totalorder %s40, 1
      %p287 = por %p285, %p286
      %p289 = scmp.ne.s32.totalorder %s272, %s288
      %p290 = scmp.eq.s32.totalorder %s40, 0
      %p291 = por %p289, %p290
      %s292 = ssub.s32 %s41, %s53
      %s293 = ssub.s32 %s42, %s49
      %s294 = sor.u32 %s292, %s293
      %p295 = scmp.eq.s32.totalorder %s294, 0
      %s297 = sadd.s32 %s296, 1
      %s298 = scalar_select %p295, %s296, %s297
      %p301 = pneg %p295
      %p302 = scmp.eq.s32.totalorder %s34, 1
      %p303 = por %p301, %p302
      %p304 = scmp.ne.s32.totalorder %s296, %s299
      %p305 = scmp.eq.s32.totalorder %s34, 0
      %p306 = por %p304, %p305
      %p307 = scmp.ne.s32.totalorder %s296, %s299
      %p308 = scmp.eq.s32.totalorder %s39, 1
      %p309 = por %p307, %p308
      %p310 = scmp.ne.s32.totalorder %s299, %s300
      %p311 = scmp.eq.s32.totalorder %s39, 0
      %p312 = por %p310, %p311
      %p313 = scmp.ne.s32.totalorder %s299, %s300
      %p314 = scmp.eq.s32.totalorder %s40, 1
      %p315 = por %p313, %p314
      %p317 = scmp.ne.s32.totalorder %s300, %s316
      %p318 = scmp.eq.s32.totalorder %s40, 0
      %p319 = por %p317, %p318
      %s320 = ssub.s32 %s41, %s53
      %s321 = ssub.s32 %s42, %s49
      %s322 = sor.u32 %s320, %s321
      %p323 = scmp.eq.s32.totalorder %s322, 0
      %s325 = sadd.s32 %s324, 1
      %s326 = scalar_select %p323, %s324, %s325
      %p329 = pneg %p323
      %p330 = scmp.eq.s32.totalorder %s34, 1
      %p331 = por %p329, %p330
      %p332 = scmp.ne.s32.totalorder %s324, %s327
      %p333 = scmp.eq.s32.totalorder %s34, 0
      %p334 = por %p332, %p333
      %p335 = scmp.ne.s32.totalorder %s324, %s327
      %p336 = scmp.eq.s32.totalorder %s39, 1
      %p337 = por %p335, %p336
      %p338 = scmp.ne.s32.totalorder %s327, %s328
      %p339 = scmp.eq.s32.totalorder %s39, 0
      %p340 = por %p338, %p339
      %p341 = scmp.ne.s32.totalorder %s327, %s328
      %p342 = scmp.eq.s32.totalorder %s40, 1
      %p343 = por %p341, %p342
      %p345 = scmp.ne.s32.totalorder %s328, %s344
      %p346 = scmp.eq.s32.totalorder %s40, 0
      %p347 = por %p345, %p346
      %s348 = ssub.s32 %s41, %s53
      %s349 = ssub.s32 %s42, %s49
      %s350 = sor.u32 %s348, %s349
      %p351 = scmp.eq.s32.totalorder %s350, 0
      %s353 = sadd.s32 %s352, 1
      %s354 = scalar_select %p351, %s352, %s353
      %p357 = pneg %p351
      %p358 = scmp.eq.s32.totalorder %s34, 1
      %p359 = por %p357, %p358
      %p360 = scmp.ne.s32.totalorder %s352, %s355
      %p361 = scmp.eq.s32.totalorder %s34, 0
      %p362 = por %p360, %p361
      %p363 = scmp.ne.s32.totalorder %s352, %s355
      %p364 = scmp.eq.s32.totalorder %s39, 1
      %p365 = por %p363, %p364
      %p366 = scmp.ne.s32.totalorder %s355, %s356
      %p367 = scmp.eq.s32.totalorder %s39, 0
      %p368 = por %p366, %p367
      %p369 = scmp.ne.s32.totalorder %s355, %s356
      %p370 = scmp.eq.s32.totalorder %s40, 1
      %p371 = por %p369, %p370
      %p373 = scmp.ne.s32.totalorder %s356, %s372
      %p374 = scmp.eq.s32.totalorder %s40, 0
      %p375 = por %p373, %p374
      %p376 = scmp.le.s32.totalorder 1, %s34
      %p377 = scmp.lt.s32.totalorder %s34, 3
      %p378 = pnand %p376, %p377
      %p379 = pneg %p378
      // Predicated region
      $region9: #{tpu_custom_call.1} parent=5 // pred_check
        _
      $region10: #{tpu_custom_call.1} parent=5 // pred_check_branch
        %381 = sbr.rel (%p378) target = $region12
      $region11: #{tpu_custom_call.1} parent=5 // pred_region
        %s382 = ssub.s32 %s34, 1
        // Predicated region
        $region13: #{tpu_custom_call.1} parent=11 // pred_check
          %p383 = pneg %p95
        $region14: #{tpu_custom_call.1} parent=11 // pred_check_branch
          %385 = sbr.rel (%p383) target = $region16
        $region15: #{tpu_custom_call.1} parent=11 // pred_region
          _
        $region16: #{tpu_custom_call.1} parent=11 // pred_fallthru
          _
        // Predicated region
        $region17: #{tpu_custom_call.1} parent=11 // pred_check
          %p386 = pneg %p116
        $region18: #{tpu_custom_call.1} parent=11 // pred_check_branch
          %388 = sbr.rel (%p386) target = $region20
        $region19: #{tpu_custom_call.1} parent=11 // pred_region
          _
        $region20: #{tpu_custom_call.1} parent=11 // pred_fallthru
          _
        // Predicated region
        $region21: #{tpu_custom_call.1} parent=11 // pred_check
          %p389 = pneg %p137
        $region22: #{tpu_custom_call.1} parent=11 // pred_check_branch
          %391 = sbr.rel (%p389) target = $region24
        $region23: #{tpu_custom_call.1} parent=11 // pred_region
          _
        $region24: #{tpu_custom_call.1} parent=11 // pred_fallthru
          _
        // Predicated region
        $region25: #{tpu_custom_call.1} parent=11 // pred_check
          %p392 = pneg %p158
        $region26: #{tpu_custom_call.1} parent=11 // pred_check_branch
          %394 = sbr.rel (%p392) target = $region28
        $region27: #{tpu_custom_call.1} parent=11 // pred_region
          _
        $region28: #{tpu_custom_call.1} parent=11 // pred_fallthru
          _
        // Predicated region
        $region29: #{tpu_custom_call.1} parent=11 // pred_check
          %p395 = pneg %p179
        $region30: #{tpu_custom_call.1} parent=11 // pred_check_branch
          %397 = sbr.rel (%p395) target = $region32
        $region31: #{tpu_custom_call.1} parent=11 // pred_region
          %s399 = ssub.s32 256, 256
          %400 = vsyncadd [#allocation7], %s399
          %s401 = sshll.u32 [#allocation6], 4
          %s402 = int_to_ptr.vmem [resolvable:$true] %s401
          %407 = dma.hbm_to_vmem [thread:$0]  %s5, 256, %s402, [#allocation7], 64, 64, 4
        $region32: #{tpu_custom_call.1} parent=11 // pred_fallthru
          _
        // Predicated region
        $region33: #{tpu_custom_call.1} parent=11 // pred_check
          %p408 = pneg %p200
        $region34: #{tpu_custom_call.1} parent=11 // pred_check_branch
          %410 = sbr.rel (%p408) target = $region36
        $region35: #{tpu_custom_call.1} parent=11 // pred_region
          %s412 = ssub.s32 256, 256
          %413 = vsyncadd [#allocation7], %s412
          %s414 = sshll.u32 [#allocation8], 4
          %s415 = int_to_ptr.vmem [resolvable:$true] %s414
          %420 = dma.hbm_to_vmem [thread:$0]  %s6, 256, %s415, [#allocation7], 64, 64, 4
        $region36: #{tpu_custom_call.1} parent=11 // pred_fallthru
          _
      $region12: #{tpu_custom_call.1} parent=5 // pred_fallthru
        _
      %p421 = scmp.lt.s32.totalorder %s34, 2
      // Predicated region
      $region37: #{tpu_custom_call.1} parent=5 // pred_check
        %p422 = pneg %p421
      $region38: #{tpu_custom_call.1} parent=5 // pred_check_branch
        %424 = sbr.rel (%p422) target = $region40
      $region39: #{tpu_custom_call.1} parent=5 // pred_region
        // Predicated region
        $region41: #{tpu_custom_call.1} parent=39 // pred_check
          %p425 = pneg %p68
        $region42: #{tpu_custom_call.1} parent=39 // pred_check_branch
          %427 = sbr.rel (%p425) target = $region44
        $region43: #{tpu_custom_call.1} parent=39 // pred_region
          %s428 = sand.u32 %s58, 1
          %s429 = scalar_lea.sflag [#allocation4], %s428
          %s430 = sand.u32 %s58, 1
          %s431 = smul.addr %s430, 16
          %s432 = scalar_lea.vmem [#allocation3], %s431
          %s433 = smul.u32 2, %s42
          %s435 = ssub.s32 256, 256
          %436 = vsyncadd %s429, %s435
          %s437 = smul.addr %s41, 2
          %s438 = sadd.s32 %s433, %s437
          %s439 = smul.addr %s438, 128
          %s440 = scalar_lea.hbm %s0, %s439
          %s441 = sshll.u32 %s432, 4
          %s442 = int_to_ptr.vmem [resolvable:$true] %s441
          %447 = dma.hbm_to_vmem [thread:$0]  %s440, 256, %s442, %s429, 128, 128, 8
        $region44: #{tpu_custom_call.1} parent=39 // pred_fallthru
          _
      $region40: #{tpu_custom_call.1} parent=5 // pred_fallthru
        _
      %p448 = scmp.le.s32.totalorder 1, %s34
      %p449 = scmp.lt.s32.totalorder %s34, 3
      %p450 = pnand %p448, %p449
      %p451 = pneg %p450
      // Predicated region
      $region45: #{tpu_custom_call.1} parent=5 // pred_check
        _
      $region46: #{tpu_custom_call.1} parent=5 // pred_check_branch
        %453 = sbr.rel (%p450) target = $region48
      $region47: #{tpu_custom_call.1} parent=5 // pred_region
        %s454 = ssub.s32 %s34, 1
        %s455 = sand.u32 %s61, 1
        %s456 = scalar_lea.sflag [#allocation4], %s455
        %s457 = sand.u32 %s61, 1
        %s458 = smul.addr %s457, 16
        %s459 = scalar_lea.vmem [#allocation3], %s458
        // Predicated region
        $region49: #{tpu_custom_call.1} parent=47 // pred_check
          %p460 = pneg %p74
        $region50: #{tpu_custom_call.1} parent=47 // pred_check_branch
          %462 = sbr.rel (%p460) target = $region52
        $region51: #{tpu_custom_call.1} parent=47 // pred_region
          %463 = dma.done %s456, 256
        $region52: #{tpu_custom_call.1} parent=47 // pred_fallthru
          _
        // Predicated region
        $region53: #{tpu_custom_call.1} parent=47 // pred_check
          %p464 = pneg %p179
        $region54: #{tpu_custom_call.1} parent=47 // pred_check_branch
          %466 = sbr.rel (%p464) target = $region56
        $region55: #{tpu_custom_call.1} parent=47 // pred_region
          %467 = dma.done [#allocation7], 256
        $region56: #{tpu_custom_call.1} parent=47 // pred_fallthru
          _
        // Predicated region
        $region57: #{tpu_custom_call.1} parent=47 // pred_check
          %p468 = pneg %p200
        $region58: #{tpu_custom_call.1} parent=47 // pred_check_branch
          %470 = sbr.rel (%p468) target = $region60
        $region59: #{tpu_custom_call.1} parent=47 // pred_region
          %471 = dma.done [#allocation7], 256
        $region60: #{tpu_custom_call.1} parent=47 // pred_fallthru
          _
        %s472 = sand.u32 %s61, 1
        %s473 = scalar_lea.sflag [#allocation4], %s472
        %s474 = sand.u32 %s61, 1
        %s475 = smul.addr %s474, 16
        %s476 = scalar_lea.vmem [#allocation3], %s475
        %p477 = pneg %p74
        %p478 = pneg %p71
        %p479 = pneg %p95
        %p480 = pneg %p92
        %p481 = pneg %p116
        %p482 = pneg %p113
        %p483 = pneg %p137
        %p484 = pneg %p134
        %p485 = pneg %p158
        %p486 = pneg %p155
        %p487 = pneg %p179
        %p488 = pneg %p176
        %p489 = pneg %p200
        %p490 = pneg %p197
        %p491 = pneg %p228
        %p492 = pneg %p225
        %s493 = sand.u32 %s215, 1
        %s494 = scalar_lea.sflag [#allocation5], %s493
        %s495 = sand.u32 %s215, 1
        %s496 = smul.addr %s495, 16
        %s497 = scalar_lea.vmem [#allocation9], %s496
        %p498 = pneg %p256
        %p499 = pneg %p253
        %s500 = sand.u32 %s39, 1
        %s501 = scalar_lea.sflag [#allocation11], %s500
        %s502 = sand.u32 %s243, 1
        %s503 = smul.addr %s502, 8
        %s504 = scalar_lea.vmem [#allocation10], %s503
        %p505 = pneg %p284
        %p506 = pneg %p281
        %s507 = sand.u32 %s39, 1
        %s508 = scalar_lea.sflag [#allocation11], %s507
        %s509 = sand.u32 %s271, 1
        %s510 = smul.addr %s509, 8
        %s511 = scalar_lea.vmem [#allocation12], %s510
        %p512 = pneg %p312
        %p513 = pneg %p309
        %s514 = sand.u32 %s39, 1
        %s515 = scalar_lea.sflag [#allocation14], %s514
        %s516 = sand.u32 %s299, 1
        %s517 = scalar_lea.vmem [#allocation13], %s516
        %p518 = pneg %p340
        %p519 = pneg %p337
        %s520 = sand.u32 %s39, 1
        %s521 = scalar_lea.sflag [#allocation14], %s520
        %s522 = sand.u32 %s327, 1
        %s523 = scalar_lea.vmem [#allocation15], %s522
        %p524 = pneg %p368
        %p525 = pneg %p365
        %s526 = smul.u32 2, %s44
        %p527 = scmp.lt.s32.totalorder %s43, 1
        %s528 = scalar_select %p527, %s43, 1
        %p529 = scmp.lt.s32.totalorder %s526, 1
        %s530 = scalar_select %p529, %s526, 1
        %s531 = smul.addr %s528, 2
        %s532 = sadd.s32 %s530, %s531
        %s533 = smul.addr %s532, 8
        %s534 = scalar_lea.vmem %s12, %s533
        %s535 = smul.u32 2, %s44
        %s536 = smul.u32 2, %s44
        %s537 = smul.u32 2, %s44
        %s538 = smul.u32 2, %s44
        %s539 = smul.u32 2, %s44
        %p540 = scmp.lt.s32.totalorder %s43, 1
        %s541 = scalar_select %p540, %s43, 1
        %p542 = scmp.lt.s32.totalorder %s539, 1
        %s543 = scalar_select %p542, %s539, 1
        %s544 = smul.addr %s541, 2
        %s545 = sadd.s32 %s543, %s544
        %s546 = smul.addr %s545, 8
        %s547 = scalar_lea.vmem %s12, %s546
        %s548 = smul.u32 2, %s44
        %v550 = vld [vmem:[%s459] sm:$0xff]
        %v551 = vld [vmem:[%s459 + $0x8] sm:$0xff]
        %v552 = vld [vmem:[%s1] sm:$0x1]
        %v553 = vld [vmem:[%s2] sm:$0x1]
        %vm554 = vcmask 261120
        %v555 = vsel %vm554, %v550, 0.0
        %556 = vadd.xlane.f32.xlu0 %v555
        %v557 = vpop.xlane.xlu0 %556
        %v558 = vsel %vm554, %v551, 0.0
        %559 = vadd.xlane.f32.xlu0 %v558
        %v560 = vpop.xlane.xlu0 %559
        %v561 = vrcp.pop 32.0
        %v562 = vmul.f32 %v557, %v561
        %v563 = vmul.f32 %v560, %v561
        %v564 = vsub.f32 %v550, %v562
        %v565 = vsub.f32 %v551, %v563
        %v566 = vmul.f32 %v564, %v564
        %v567 = vmul.f32 %v565, %v565
        %v568 = vsel %vm554, %v566, 0.0
        %569 = vadd.xlane.f32.xlu0 %v568
        %v570 = vpop.xlane.xlu0 %569
        %v571 = vsel %vm554, %v567, 0.0
        %572 = vadd.xlane.f32.xlu0 %v571
        %v573 = vpop.xlane.xlu0 %572
        %v574 = vmul.f32 %v570, %v561
        %v575 = vmul.f32 %v573, %v561
        %v576 = vadd.f32 %v574, 1e-05
        %v577 = vadd.f32 %v575, 1e-05
        %v578 = vrsqrt.pop %v576
        %v579 = vrsqrt.pop %v577
        %v580 = vmul.f32 %v564, %v578
        %v581 = vmul.f32 %v565, %v579
        %v583 = vlaneseq
        %v584 = vshrl.u32 %v583, 7
        %v585 = vsub.s32 0, %v584
        %v586 = vrot.slane %v552, %v585
        %v588 = vmul.f32 %v580, %v586
        %v589 = vmul.f32 %v581, %v586
        %v591 = vlaneseq
        %v592 = vshrl.u32 %v591, 7
        %v593 = vsub.s32 0, %v592
        %v594 = vrot.slane %v553, %v593
        %v596 = vadd.f32 %v588, %v594
        %v597 = vadd.f32 %v589, %v594
        %598 = vst.msk [vmem:[%s497] sm:$0xff] %vm554, %v596
        %599 = vst.msk [vmem:[%s497 + $0x8] sm:$0xff] %vm554, %v597
        %v600 = vpack.c.bf16 %v597, %v596
        %v601 = vld [vmem:[#allocation6] sm:$0xf]
        %v602 = vld [vmem:[#allocation6 + $0x4] sm:$0xf]
        %v603 = vld [vmem:[#allocation6 + $0x8] sm:$0xf]
        %v604 = vld [vmem:[#allocation6 + $0xc] sm:$0xf]
        %v609 = vunpack.c.l.b16 %v601
        %v610 = vunpack.c.l.b16 %v602
        %v611 = vunpack.c.l.b16 %v603
        %v612 = vunpack.c.l.b16 %v604
        %v613 = vpack.c.b16 %v610, %v609
        %v614 = vpack.c.b16 %v612, %v611
        %v618 = vsel %vm554, %v600, 0
        %620 = vmatprep.subr.bf16.mxu0 0
        %621 = vmatpush1.bf16.msra.mxu0 0
        %622 = vmatprep.subr.bf16.mxu0 0
        %623 = vmatpush1.bf16.msra.mxu0 0
        %624 = vmatprep.subr.bf16.mxu0 0
        %625 = vmatpush1.bf16.msra.mxu0 0
        %626 = vmatprep.subr.bf16.mxu0 0
        %627 = vmatpush1.bf16.msra.mxu0 0
        %628 = vmatprep.subr.bf16.mxu0 0
        %629 = vmatpush1.bf16.msra.mxu0 0
        %630 = vmatprep.subr.bf16.mxu0 0
        %631 = vmatpush1.bf16.msra.mxu0 0
        %632 = vmatprep.subr.bf16.mxu0 0
        %633 = vmatpush1.bf16.msra.mxu0 %v614
        %634 = vmatprep.subr.bf16.mxu0 0
        %635 = vmatpush1.bf16.msra.mxu0 %v613
        %636 = vmatprep.subr.bf16.mxu0 0
        %637 = vmatpush2.bf16.msra.mxu0 0
        %638 = vmatprep.subr.bf16.mxu0 0
        %639 = vmatpush2.bf16.msra.mxu0 0
        %640 = vmatprep.subr.bf16.mxu0 0
        %641 = vmatpush2.bf16.msra.mxu0 0
        %642 = vmatprep.subr.bf16.mxu0 0
        %643 = vmatpush2.bf16.msra.mxu0 0
        %644 = vmatprep.subr.bf16.mxu0 0
        %645 = vmatpush2.bf16.msra.mxu0 0
        %646 = vmatprep.subr.bf16.mxu0 0
        %647 = vmatpush2.bf16.msra.mxu0 0
        %648 = vmatprep.subr.bf16.mxu0 0
        %649 = vmatpush2.bf16.msra.mxu0 0
        %650 = vmatprep.subr.bf16.mxu0 0
        %651 = vmatpush2.bf16.msra.mxu0 0
        %652 = vmatprep.mubr.bf16.mxu0 0
        %653 = vmatmul.mubr.bf16.gmra.mxu0 %v618
        %v654 = vpop.f32.mrf.mxu0
        %v655 = vadd.f32 0.0, %v654
        %v656 = vpop.f32.mrf.mxu0
        %v657 = vpop.f32.mrf.mxu0
        %v658 = vadd.f32 0.0, %v657
        %v659 = vpop.f32.mrf.mxu0
        %660 = vdwg.mxu0
        %v661 = vpack.c.bf16 %v658, %v655
        %v663 = vunpack.c.l.b16 %v661
        %v664 = vunpack.c.h.b16 %v661
        %v665 = vpack.c.b16 %v663, %v663
        %v666 = vpack.c.b16 %v664, %v664
        %vm669 = vcmask 257024
        %670 = vst.msk [vmem:[%s504] sm:$0xf] %vm669, %v665
        %671 = vst.msk [vmem:[%s504 + $0x4] sm:$0xf] %vm669, %v666
        %v672 = vld [vmem:[#allocation8] sm:$0xf]
        %v673 = vld [vmem:[#allocation8 + $0x4] sm:$0xf]
        %v674 = vld [vmem:[#allocation8 + $0x8] sm:$0xf]
        %v675 = vld [vmem:[#allocation8 + $0xc] sm:$0xf]
        %v680 = vunpack.c.l.b16 %v672
        %v681 = vunpack.c.l.b16 %v673
        %v682 = vunpack.c.l.b16 %v674
        %v683 = vunpack.c.l.b16 %v675
        %v684 = vpack.c.b16 %v681, %v680
        %v685 = vpack.c.b16 %v683, %v682
        %688 = vmatprep.subr.bf16.mxu0 0
        %689 = vmatpush1.bf16.msra.mxu0 0
        %690 = vmatprep.subr.bf16.mxu0 0
        %691 = vmatpush1.bf16.msra.mxu0 0
        %692 = vmatprep.subr.bf16.mxu0 0
        %693 = vmatpush1.bf16.msra.mxu0 0
        %694 = vmatprep.subr.bf16.mxu0 0
        %695 = vmatpush1.bf16.msra.mxu0 0
        %696 = vmatprep.subr.bf16.mxu0 0
        %697 = vmatpush1.bf16.msra.mxu0 0
        %698 = vmatprep.subr.bf16.mxu0 0
        %699 = vmatpush1.bf16.msra.mxu0 0
        %700 = vmatprep.subr.bf16.mxu0 0
        %701 = vmatpush1.bf16.msra.mxu0 %v685
        %702 = vmatprep.subr.bf16.mxu0 0
        %703 = vmatpush1.bf16.msra.mxu0 %v684
        %704 = vmatprep.subr.bf16.mxu0 0
        %705 = vmatpush2.bf16.msra.mxu0 0
        %706 = vmatprep.subr.bf16.mxu0 0
        %707 = vmatpush2.bf16.msra.mxu0 0
        %708 = vmatprep.subr.bf16.mxu0 0
        %709 = vmatpush2.bf16.msra.mxu0 0
        %710 = vmatprep.subr.bf16.mxu0 0
        %711 = vmatpush2.bf16.msra.mxu0 0
        %712 = vmatprep.subr.bf16.mxu0 0
        %713 = vmatpush2.bf16.msra.mxu0 0
        %714 = vmatprep.subr.bf16.mxu0 0
        %715 = vmatpush2.bf16.msra.mxu0 0
        %716 = vmatprep.subr.bf16.mxu0 0
        %717 = vmatpush2.bf16.msra.mxu0 0
        %718 = vmatprep.subr.bf16.mxu0 0
        %719 = vmatpush2.bf16.msra.mxu0 0
        %720 = vmatprep.mubr.bf16.mxu0 0
        %721 = vmatmul.mubr.bf16.gmra.mxu0 %v618
        %v722 = vpop.f32.mrf.mxu0
        %v723 = vadd.f32 0.0, %v722
        %v724 = vpop.f32.mrf.mxu0
        %v725 = vpop.f32.mrf.mxu0
        %v726 = vadd.f32 0.0, %v725
        %v727 = vpop.f32.mrf.mxu0
        %728 = vdwg.mxu0
        %v729 = vpack.c.bf16 %v726, %v723
        %v731 = vunpack.c.l.b16 %v729
        %v732 = vunpack.c.h.b16 %v729
        %v733 = vpack.c.b16 %v731, %v731
        %v734 = vpack.c.b16 %v732, %v732
        %737 = vst.msk [vmem:[%s511] sm:$0xf] %vm669, %v733
        %738 = vst.msk [vmem:[%s511 + $0x4] sm:$0xf] %vm669, %v734
        %v739 = vld [vmem:[%s3] sm:$0x1]
        %v740 = vld [vmem:[#allocation2] sm:$0x1]
        %742 = vset.pattern.permute.xlu0 0
        %743 = vperm.xlu0 %742, %v740
        %v744 = vpop.permute.xlu0 %743
        %v746 = vlaneseq
        %v747 = vshrl.u32 %v746, 7
        %v748 = vsub.s32 0, %v747
        %v749 = vrot.slane %v744, %v748
        %v751 = vsel %vm554, %v739, 0
        %v754 = vsel %vm554, %v596, 0
        %v757 = vsel %vm554, %v597, 0
        %759 = vmatprep.subr.mxu0 0.0
        %760 = vmatpush1.xpose.msra.mxu0 0.0
        %761 = vmatprep.subr.mxu0 0.0
        %762 = vmatpush1.xpose.msra.mxu0 0.0
        %763 = vmatprep.subr.mxu0 0.0
        %764 = vmatpush1.xpose.msra.mxu0 0.0
        %765 = vmatprep.subr.mxu0 0.0
        %766 = vmatpush1.xpose.msra.mxu0 0.0
        %767 = vmatprep.subr.mxu0 0.0
        %768 = vmatpush1.xpose.msra.mxu0 0.0
        %769 = vmatprep.subr.mxu0 0.0
        %770 = vmatpush1.xpose.msra.mxu0 0.0
        %771 = vmatprep.subr.mxu0 0.0
        %772 = vmatpush1.xpose.msra.mxu0 0.0
        %773 = vmatprep.subr.mxu0 0.0
        %774 = vmatpush1.xpose.msra.mxu0 0.0
        %775 = vmatprep.subr.mxu0 0.0
        %776 = vmatpush1.xpose.msra.mxu0 0.0
        %777 = vmatprep.subr.mxu0 0.0
        %778 = vmatpush1.xpose.msra.mxu0 0.0
        %779 = vmatprep.subr.mxu0 0.0
        %780 = vmatpush1.xpose.msra.mxu0 0.0
        %781 = vmatprep.subr.mxu0 0.0
        %782 = vmatpush1.xpose.msra.mxu0 0.0
        %783 = vmatprep.subr.mxu0 0.0
        %784 = vmatpush1.xpose.msra.mxu0 0.0
        %785 = vmatprep.subr.mxu0 0.0
        %786 = vmatpush1.xpose.msra.mxu0 0.0
        %787 = vmatprep.subr.mxu0 0.0
        %788 = vmatpush1.xpose.msra.mxu0 %v757
        %789 = vmatprep.subr.mxu0 0.0
        %790 = vmatpush1.xpose.msra.mxu0 %v754
        %791 = vmatprep.subr.mxu0 0.0
        %792 = vmatpush2.xpose.msra.mxu0 0.0
        %793 = vmatprep.subr.mxu0 0.0
        %794 = vmatpush2.xpose.msra.mxu0 0.0
        %795 = vmatprep.subr.mxu0 0.0
        %796 = vmatpush2.xpose.msra.mxu0 0.0
        %797 = vmatprep.subr.mxu0 0.0
        %798 = vmatpush2.xpose.msra.mxu0 0.0
        %799 = vmatprep.subr.mxu0 0.0
        %800 = vmatpush2.xpose.msra.mxu0 0.0
        %801 = vmatprep.subr.mxu0 0.0
        %802 = vmatpush2.xpose.msra.mxu0 0.0
        %803 = vmatprep.subr.mxu0 0.0
        %804 = vmatpush2.xpose.msra.mxu0 0.0
        %805 = vmatprep.subr.mxu0 0.0
        %806 = vmatpush2.xpose.msra.mxu0 0.0
        %807 = vmatprep.subr.mxu0 0.0
        %808 = vmatpush2.xpose.msra.mxu0 0.0
        %809 = vmatprep.subr.mxu0 0.0
        %810 = vmatpush2.xpose.msra.mxu0 0.0
        %811 = vmatprep.subr.mxu0 0.0
        %812 = vmatpush2.xpose.msra.mxu0 0.0
        %813 = vmatprep.subr.mxu0 0.0
        %814 = vmatpush2.xpose.msra.mxu0 0.0
        %815 = vmatprep.subr.mxu0 0.0
        %816 = vmatpush2.xpose.msra.mxu0 0.0
        %817 = vmatprep.subr.mxu0 0.0
        %818 = vmatpush2.xpose.msra.mxu0 0.0
        %819 = vmatprep.subr.mxu0 0.0
        %820 = vmatpush2.xpose.msra.mxu0 0.0
        %821 = vmatprep.subr.mxu0 0.0
        %822 = vmatpush2.xpose.msra.mxu0 0.0
        %823 = vmatprep.mubr.f32.mxu0 0.0
        %824 = vmatmul.mubr.f32.gmra.mxu0 %v751
        %v825 = vpop.f32.mrf.mxu0
        %v826 = vadd.f32 %v749, %v825
        %v827 = vpop.f32.mrf.mxu0
        %828 = vdwg.mxu0
        %vm829 = vcmask 122880
        %830 = vst.msk [vmem:[%s517] sm:$0x1] %vm829, %v826
        %v831 = vmul.f32 %v596, %v596
        %v832 = vmul.f32 %v597, %v597
        %v833 = vsel %vm554, %v831, 0.0
        %834 = vadd.xlane.f32.xlu0 %v833
        %v835 = vpop.xlane.xlu0 %834
        %v836 = vsel %vm554, %v832, 0.0
        %837 = vadd.xlane.f32.xlu0 %v836
        %v838 = vpop.xlane.xlu0 %837
        %vm839 = vcmask 7168
        %840 = vst.msk [vmem:[%s547] sm:$0xff] %vm839, %v835
        %841 = vst.msk [vmem:[%s547 + $0x8] sm:$0xff] %vm839, %v838
        %v843 = vsel %vm554, 1.0, 0
        %v846 = vsel %vm554, %v831, 0
        %v849 = vsel %vm554, %v832, 0
        %851 = vmatprep.subr.mxu0 0.0
        %852 = vmatpush1.xpose.msra.mxu0 0.0
        %853 = vmatprep.subr.mxu0 0.0
        %854 = vmatpush1.xpose.msra.mxu0 0.0
        %855 = vmatprep.subr.mxu0 0.0
        %856 = vmatpush1.xpose.msra.mxu0 0.0
        %857 = vmatprep.subr.mxu0 0.0
        %858 = vmatpush1.xpose.msra.mxu0 0.0
        %859 = vmatprep.subr.mxu0 0.0
        %860 = vmatpush1.xpose.msra.mxu0 0.0
        %861 = vmatprep.subr.mxu0 0.0
        %862 = vmatpush1.xpose.msra.mxu0 0.0
        %863 = vmatprep.subr.mxu0 0.0
        %864 = vmatpush1.xpose.msra.mxu0 0.0
        %865 = vmatprep.subr.mxu0 0.0
        %866 = vmatpush1.xpose.msra.mxu0 0.0
        %867 = vmatprep.subr.mxu0 0.0
        %868 = vmatpush1.xpose.msra.mxu0 0.0
        %869 = vmatprep.subr.mxu0 0.0
        %870 = vmatpush1.xpose.msra.mxu0 0.0
        %871 = vmatprep.subr.mxu0 0.0
        %872 = vmatpush1.xpose.msra.mxu0 0.0
        %873 = vmatprep.subr.mxu0 0.0
        %874 = vmatpush1.xpose.msra.mxu0 0.0
        %875 = vmatprep.subr.mxu0 0.0
        %876 = vmatpush1.xpose.msra.mxu0 0.0
        %877 = vmatprep.subr.mxu0 0.0
        %878 = vmatpush1.xpose.msra.mxu0 0.0
        %879 = vmatprep.subr.mxu0 0.0
        %880 = vmatpush1.xpose.msra.mxu0 %v849
        %881 = vmatprep.subr.mxu0 0.0
        %882 = vmatpush1.xpose.msra.mxu0 %v846
        %883 = vmatprep.subr.mxu0 0.0
        %884 = vmatpush2.xpose.msra.mxu0 0.0
        %885 = vmatprep.subr.mxu0 0.0
        %886 = vmatpush2.xpose.msra.mxu0 0.0
        %887 = vmatprep.subr.mxu0 0.0
        %888 = vmatpush2.xpose.msra.mxu0 0.0
        %889 = vmatprep.subr.mxu0 0.0
        %890 = vmatpush2.xpose.msra.mxu0 0.0
        %891 = vmatprep.subr.mxu0 0.0
        %892 = vmatpush2.xpose.msra.mxu0 0.0
        %893 = vmatprep.subr.mxu0 0.0
        %894 = vmatpush2.xpose.msra.mxu0 0.0
        %895 = vmatprep.subr.mxu0 0.0
        %896 = vmatpush2.xpose.msra.mxu0 0.0
        %897 = vmatprep.subr.mxu0 0.0
        %898 = vmatpush2.xpose.msra.mxu0 0.0
        %899 = vmatprep.subr.mxu0 0.0
        %900 = vmatpush2.xpose.msra.mxu0 0.0
        %901 = vmatprep.subr.mxu0 0.0
        %902 = vmatpush2.xpose.msra.mxu0 0.0
        %903 = vmatprep.subr.mxu0 0.0
        %904 = vmatpush2.xpose.msra.mxu0 0.0
        %905 = vmatprep.subr.mxu0 0.0
        %906 = vmatpush2.xpose.msra.mxu0 0.0
        %907 = vmatprep.subr.mxu0 0.0
        %908 = vmatpush2.xpose.msra.mxu0 0.0
        %909 = vmatprep.subr.mxu0 0.0
        %910 = vmatpush2.xpose.msra.mxu0 0.0
        %911 = vmatprep.subr.mxu0 0.0
        %912 = vmatpush2.xpose.msra.mxu0 0.0
        %913 = vmatprep.subr.mxu0 0.0
        %914 = vmatpush2.xpose.msra.mxu0 0.0
        %915 = vmatprep.mubr.f32.mxu0 0.0
        %916 = vmatmul.mubr.f32.gmra.mxu0 %v843
        %v917 = vpop.f32.mrf.mxu0
        %v918 = vadd.f32 0.0, %v917
        %v919 = vpop.f32.mrf.mxu0
        %920 = vdwg.mxu0
        %921 = vst.msk [vmem:[%s523] sm:$0x1] %vm829, %v918
        %s922 = sand.u32 %s215, 1
        %s923 = scalar_lea.sflag [#allocation5], %s922
        %s924 = sand.u32 %s215, 1
        %s925 = smul.addr %s924, 16
        %s926 = scalar_lea.vmem [#allocation9], %s925
        %s927 = sand.u32 %s39, 1
        %s928 = scalar_lea.sflag [#allocation11], %s927
        %s929 = sand.u32 %s243, 1
        %s930 = smul.addr %s929, 8
        %s931 = scalar_lea.vmem [#allocation10], %s930
        %s932 = sand.u32 %s39, 1
        %s933 = scalar_lea.sflag [#allocation11], %s932
        %s934 = sand.u32 %s271, 1
        %s935 = smul.addr %s934, 8
        %s936 = scalar_lea.vmem [#allocation12], %s935
        %s937 = sand.u32 %s39, 1
        %s938 = scalar_lea.sflag [#allocation14], %s937
        %s939 = sand.u32 %s299, 1
        %s940 = scalar_lea.vmem [#allocation13], %s939
        %s941 = sand.u32 %s39, 1
        %s942 = scalar_lea.sflag [#allocation14], %s941
        %s943 = sand.u32 %s327, 1
        %s944 = scalar_lea.vmem [#allocation15], %s943
        %s945 = smul.u32 2, %s44
        %p946 = scmp.lt.s32.totalorder %s43, 1
        %s947 = scalar_select %p946, %s43, 1
        %p948 = scmp.lt.s32.totalorder %s945, 1
        %s949 = scalar_select %p948, %s945, 1
        %s950 = smul.addr %s947, 2
        %s951 = sadd.s32 %s949, %s950
        %s952 = smul.addr %s951, 8
        %s953 = scalar_lea.vmem %s12, %s952
        // Predicated region
        $region61: #{tpu_custom_call.1} parent=47 // pred_check
          %p954 = pneg %p225
        $region62: #{tpu_custom_call.1} parent=47 // pred_check_branch
          %956 = sbr.rel (%p954) target = $region64
        $region63: #{tpu_custom_call.1} parent=47 // pred_region
          %s957 = smul.u32 2, %s44
          %s959 = ssub.s32 256, 256
          %960 = vsyncadd %s923, %s959
          %s961 = smul.addr %s43, 2
          %s962 = sadd.s32 %s957, %s961
          %s963 = smul.addr %s962, 128
          %s964 = scalar_lea.hbm %s7, %s963
          %s965 = sshll.u32 %s926, 4
          %s966 = int_to_ptr.vmem [resolvable:$true] %s965
          %971 = dma.vmem_to_hbm [thread:$0]  %s966, 256, %s964, %s923, 128, 128, 8
        $region64: #{tpu_custom_call.1} parent=47 // pred_fallthru
          _
        // Predicated region
        $region65: #{tpu_custom_call.1} parent=47 // pred_check
          %p972 = pneg %p253
        $region66: #{tpu_custom_call.1} parent=47 // pred_check_branch
          %974 = sbr.rel (%p972) target = $region68
        $region67: #{tpu_custom_call.1} parent=47 // pred_region
          %s975 = smul.u32 2, %s44
          %s977 = ssub.s32 128, 128
          %978 = vsyncadd %s928, %s977
          %s979 = smul.addr %s43, 2
          %s980 = sadd.s32 %s975, %s979
          %s981 = smul.addr %s980, 64
          %s982 = scalar_lea.hbm %s8, %s981
          %s983 = sshll.u32 %s931, 4
          %s984 = int_to_ptr.vmem [resolvable:$true] %s983
          %989 = dma.vmem_to_hbm [thread:$0]  %s984, 128, %s982, %s928, 64, 64, 4
        $region68: #{tpu_custom_call.1} parent=47 // pred_fallthru
          _
        // Predicated region
        $region69: #{tpu_custom_call.1} parent=47 // pred_check
          %p990 = pneg %p281
        $region70: #{tpu_custom_call.1} parent=47 // pred_check_branch
          %992 = sbr.rel (%p990) target = $region72
        $region71: #{tpu_custom_call.1} parent=47 // pred_region
          %s993 = smul.u32 2, %s44
          %s995 = ssub.s32 128, 128
          %996 = vsyncadd %s933, %s995
          %s997 = smul.addr %s43, 2
          %s998 = sadd.s32 %s993, %s997
          %s999 = smul.addr %s998, 64
          %s1000 = scalar_lea.hbm %s9, %s999
          %s1001 = sshll.u32 %s936, 4
          %s1002 = int_to_ptr.vmem [resolvable:$true] %s1001
          %1007 = dma.vmem_to_hbm [thread:$0]  %s1002, 128, %s1000, %s933, 64, 64, 4
        $region72: #{tpu_custom_call.1} parent=47 // pred_fallthru
          _
        // Predicated region
        $region73: #{tpu_custom_call.1} parent=47 // pred_check
          %p1008 = pneg %p309
        $region74: #{tpu_custom_call.1} parent=47 // pred_check_branch
          %1010 = sbr.rel (%p1008) target = $region76
        $region75: #{tpu_custom_call.1} parent=47 // pred_region
          %s1012 = ssub.s32 16, 16
          %1013 = vsyncadd %s938, %s1012
          %s1014 = sadd.s32 %s44, %s43
          %s1015 = smul.addr %s1014, 16
          %s1016 = scalar_lea.hbm %s10, %s1015
          %s1018 = sshll.u32 %s940, 4
          %s1019 = int_to_ptr.vmem [resolvable:$true] %s1018
          %1021 = dma.vmem_to_hbm [thread:$0]  %s1019, 16, %s1016, %s938
        $region76: #{tpu_custom_call.1} parent=47 // pred_fallthru
          _
        // Predicated region
        $region77: #{tpu_custom_call.1} parent=47 // pred_check
          %p1022 = pneg %p337
        $region78: #{tpu_custom_call.1} parent=47 // pred_check_branch
          %1024 = sbr.rel (%p1022) target = $region80
        $region79: #{tpu_custom_call.1} parent=47 // pred_region
          %s1026 = ssub.s32 16, 16
          %1027 = vsyncadd %s942, %s1026
          %s1028 = sadd.s32 %s44, %s43
          %s1029 = smul.addr %s1028, 16
          %s1030 = scalar_lea.hbm %s11, %s1029
          %s1032 = sshll.u32 %s944, 4
          %s1033 = int_to_ptr.vmem [resolvable:$true] %s1032
          %1035 = dma.vmem_to_hbm [thread:$0]  %s1033, 16, %s1030, %s942
        $region80: #{tpu_custom_call.1} parent=47 // pred_fallthru
          _
        // Predicated region
        $region81: #{tpu_custom_call.1} parent=47 // pred_check
          %p1036 = pneg %p365
        $region82: #{tpu_custom_call.1} parent=47 // pred_check_branch
          %1038 = sbr.rel (%p1036) target = $region84
        $region83: #{tpu_custom_call.1} parent=47 // pred_region
          %s1039 = smul.u32 2, %s44
        $region84: #{tpu_custom_call.1} parent=47 // pred_fallthru
          _
      $region48: #{tpu_custom_call.1} parent=5 // pred_fallthru
        _
      %p1040 = scmp.le.s32.totalorder 2, %s34
      // Predicated region
      $region85: #{tpu_custom_call.1} parent=5 // pred_check
        %p1041 = pneg %p1040
      $region86: #{tpu_custom_call.1} parent=5 // pred_check_branch
        %1043 = sbr.rel (%p1041) target = $region88
      $region87: #{tpu_custom_call.1} parent=5 // pred_region
        %s1044 = ssub.s32 %s34, 2
        // Predicated region
        $region89: #{tpu_custom_call.1} parent=87 // pred_check
          %p1045 = pneg %p231
        $region90: #{tpu_custom_call.1} parent=87 // pred_check_branch
          %1047 = sbr.rel (%p1045) target = $region92
        $region91: #{tpu_custom_call.1} parent=87 // pred_region
          %s1048 = sand.u32 %s216, 1
          %s1049 = scalar_lea.sflag [#allocation5], %s1048
          %s1050 = sand.u32 %s216, 1
          %s1051 = smul.addr %s1050, 16
          %s1052 = scalar_lea.vmem [#allocation9], %s1051
          %1053 = dma.done %s1049, 256
        $region92: #{tpu_custom_call.1} parent=87 // pred_fallthru
          _
        // Predicated region
        $region93: #{tpu_custom_call.1} parent=87 // pred_check
          %p1054 = pneg %p259
        $region94: #{tpu_custom_call.1} parent=87 // pred_check_branch
          %1056 = sbr.rel (%p1054) target = $region96
        $region95: #{tpu_custom_call.1} parent=87 // pred_region
          %s1057 = sand.u32 %s40, 1
          %s1058 = scalar_lea.sflag [#allocation11], %s1057
          %s1059 = sand.u32 %s244, 1
          %s1060 = smul.addr %s1059, 8
          %s1061 = scalar_lea.vmem [#allocation10], %s1060
          %1062 = dma.done %s1058, 128
        $region96: #{tpu_custom_call.1} parent=87 // pred_fallthru
          _
        // Predicated region
        $region97: #{tpu_custom_call.1} parent=87 // pred_check
          %p1063 = pneg %p287
        $region98: #{tpu_custom_call.1} parent=87 // pred_check_branch
          %1065 = sbr.rel (%p1063) target = $region100
        $region99: #{tpu_custom_call.1} parent=87 // pred_region
          %s1066 = sand.u32 %s40, 1
          %s1067 = scalar_lea.sflag [#allocation11], %s1066
          %s1068 = sand.u32 %s272, 1
          %s1069 = smul.addr %s1068, 8
          %s1070 = scalar_lea.vmem [#allocation12], %s1069
          %1071 = dma.done %s1067, 128
        $region100: #{tpu_custom_call.1} parent=87 // pred_fallthru
          _
        // Predicated region
        $region101: #{tpu_custom_call.1} parent=87 // pred_check
          %p1072 = pneg %p315
        $region102: #{tpu_custom_call.1} parent=87 // pred_check_branch
          %1074 = sbr.rel (%p1072) target = $region104
        $region103: #{tpu_custom_call.1} parent=87 // pred_region
          %s1075 = sand.u32 %s40, 1
          %s1076 = scalar_lea.sflag [#allocation14], %s1075
          %s1077 = sand.u32 %s300, 1
          %s1078 = scalar_lea.vmem [#allocation13], %s1077
          %1079 = dma.done %s1076, 16
        $region104: #{tpu_custom_call.1} parent=87 // pred_fallthru
          _
        // Predicated region
        $region105: #{tpu_custom_call.1} parent=87 // pred_check
          %p1080 = pneg %p343
        $region106: #{tpu_custom_call.1} parent=87 // pred_check_branch
          %1082 = sbr.rel (%p1080) target = $region108
        $region107: #{tpu_custom_call.1} parent=87 // pred_region
          %s1083 = sand.u32 %s40, 1
          %s1084 = scalar_lea.sflag [#allocation14], %s1083
          %s1085 = sand.u32 %s328, 1
          %s1086 = scalar_lea.vmem [#allocation15], %s1085
          %1087 = dma.done %s1084, 16
        $region108: #{tpu_custom_call.1} parent=87 // pred_fallthru
          _
        // Predicated region
        $region109: #{tpu_custom_call.1} parent=87 // pred_check
          %p1088 = pneg %p371
        $region110: #{tpu_custom_call.1} parent=87 // pred_check_branch
          %1090 = sbr.rel (%p1088) target = $region112
        $region111: #{tpu_custom_call.1} parent=87 // pred_region
          %s1091 = smul.u32 2, %s46
          %p1092 = scmp.lt.s32.totalorder %s45, 1
          %s1093 = scalar_select %p1092, %s45, 1
          %p1094 = scmp.lt.s32.totalorder %s1091, 1
          %s1095 = scalar_select %p1094, %s1091, 1
          %s1096 = smul.addr %s1093, 2
          %s1097 = sadd.s32 %s1095, %s1096
          %s1098 = smul.addr %s1097, 8
          %s1099 = scalar_lea.vmem %s12, %s1098
        $region112: #{tpu_custom_call.1} parent=87 // pred_fallthru
          _
      $region88: #{tpu_custom_call.1} parent=5 // pred_fallthru
        _
    $region6: #{tpu_custom_call.1} parent=1 // loop_footer
      %s38 = sadd.s32 1, %s34
    $region7: #{tpu_custom_call.1} parent=1 // loop_footer_branch
      %33 = sbr.rel target = $region3
    $region8: #{tpu_custom_call.1} parent=1 // loop_exit
      _
    %1100 = vsyncpa [#allocation4], 1
    %s1101 = scalar_lea.sflag [#allocation4], 1
    %1102 = vsyncpa %s1101, 1
    %1103 = vsyncpa [#allocation7], 1
    %1104 = vsyncpa [#allocation5], 1
    %s1105 = scalar_lea.sflag [#allocation5], 1
    %1106 = vsyncpa %s1105, 1
    %1107 = vsyncpa [#allocation11], 1
    %s1108 = scalar_lea.sflag [#allocation11], 1
    %1109 = vsyncpa %s1108, 1
    %1110 = vsyncpa [#allocation14], 1
    %s1111 = scalar_lea.sflag [#allocation14], 1
    %1112 = vsyncpa %s1111, 1

</llo_original>
